<compile_context>
chip_gen: v7x
topology: tpu7x:2x2x1
jax: 0.10.0
libtpu: 0.0.40
codegen_flags: <defaults>
</compile_context>

<pallas_src>
import jax
import jax.numpy as jnp
from jax.experimental import pallas as pl
from jax.experimental.pallas import tpu as pltpu


def ia_layer_kernel(img_ref, pt_ref,
                    s1_ref, t1_ref,          # folded BN over img   (1, ic)
                    w1_ref,                  # fc1 weight           (ic, rc)
                    w2_ref,                  # fc2 weight           (pc, rc)
                    b12_ref,                 # b1 + b2              (1, rc)
                    w3_ref,                  # fc3 weight as a row  (1, rc)
                    b3_ref,                  # fc3 bias, scalar in SMEM (1,)
                    wc_ref,                  # conv1 1x1 weight     (ic, pc)
                    sc_ref, tc_ref,          # folded conv BN       (1, pc)
                    out_ref):                # (pc, tm) -- stored transposed
    # Inputs stay in their streamed dtype; every op below meets an f32 param,
    # so dtype promotion keeps all math (and MXU accumulation) in f32.
    img = img_ref[...]                        # (tm, ic)
    pt = pt_ref[...]                          # (tm, pc)

    # ---- fc1: BatchNorm1d -> ReLU -> Linear(ic, rc) ----
    x = jnp.maximum(img * s1_ref[...] + t1_ref[...], 0.0)             # (tm, ic) f32
    ri = jnp.dot(x, w1_ref[...], preferred_element_type=jnp.float32)  # (tm, rc)

    # ---- fc2: Linear(pc, rc)  (b1 and b2 folded into a single bias add) ----
    rp = jnp.dot(pt, w2_ref[...], preferred_element_type=jnp.float32)  # (tm, rc)
    t = jnp.tanh(ri + rp + b12_ref[...])                               # (tm, rc)

    # ---- fc3 (rc -> 1): VPU multiply + XLU lane reduction instead of an
    #      N=1 MXU matmul (rides otherwise-idle slots). ----
    logit = jnp.sum(t * w3_ref[...], axis=-1, keepdims=True) + b3_ref[0]
    att = jax.nn.sigmoid(logit)                                        # (tm, 1)

    # ---- conv1: 1x1 Conv1d (== matmul) -> BatchNorm1d -> ReLU ----
    y = jnp.dot(img, wc_ref[...], preferred_element_type=jnp.float32)  # (tm, pc)
    y = jnp.maximum(y * sc_ref[...] + tc_ref[...], 0.0)

    # ---- modulate by attention and store directly in (pc, N) layout ----
    out_ref[...] = jnp.transpose(y * att, (1, 0)).astype(out_ref.dtype)


def _round_up(x, m):
    return ((x + m - 1) // m) * m


def _num_tensorcores():
    """Best-effort count of TensorCores per chip (megacore sharding target)."""
    try:
        kind = jax.devices()[0].device_kind.lower()
    except Exception:
        return 1
    # v7x exposes 2 TensorCores per chip; v5e/v6e have 1.
    return 2 if ("7x" in kind or "v7" in kind) else 1


def _choose_tm(N, tm_req, num_cores):
    """Row tile: multiple of 128, as large as useful (kernel is HBM-bound).

    Only on multi-TensorCore chips (v7x) do we shrink to keep >=2 grid steps
    per core (so each core still overlaps DMA with compute), and never below
    512 rows so per-step overhead stays small.  On single-TC chips the grid
    is a serial loop: one big tile is strictly better.
    """
    tm = max(128, (int(tm_req) // 128) * 128)
    tm = min(tm, _round_up(max(int(N), 1), 128))   # never bigger than needed
    if num_cores > 1:
        target_steps = 2 * num_cores
        while tm > 512 and pl.cdiv(N, tm) < target_steps:
            tm -= 128
    return tm


def ia_layer_forward(img_feats, point_feats, params, *, tm=4096, out_dtype=None):
    """img_feats (N, ic), point_feats (N, pc) -> out (1, pc, N)  [matches PyTorch].

    out_dtype: dtype of the returned tensor (default: img_feats.dtype).  Inputs
    are streamed in whatever dtype they arrive in -- no wrapper-side casts.
    """
    N, ic = img_feats.shape
    n2, pc = point_feats.shape
    assert n2 == N
    rc = params["w1"].shape[1]
    eps = 1e-5

    # ---- fold eval-mode BatchNorms into per-channel scale / shift (glue) ----
    s1 = params["bn1_gamma"] / jnp.sqrt(params["bn1_var"] + eps)
    t1 = params["bn1_beta"] - params["bn1_mean"] * s1
    sc = params["bnc_gamma"] / jnp.sqrt(params["bnc_var"] + eps)
    # conv bias folds into the BN shift: bn(xW + b) = sc*(xW) + (sc*b + shift)
    tc = params["bnc_beta"] - params["bnc_mean"] * sc + params["conv_b"] * sc

    s1 = s1.reshape(1, ic).astype(jnp.float32)
    t1 = t1.reshape(1, ic).astype(jnp.float32)
    sc = sc.reshape(1, pc).astype(jnp.float32)
    tc = tc.reshape(1, pc).astype(jnp.float32)
    b12 = (params["b1"] + params["b2"]).reshape(1, rc).astype(jnp.float32)
    w3_row = params["w3"].reshape(1, rc).astype(jnp.float32)
    b3 = params["b3"].reshape(1).astype(jnp.float32)
    w1 = params["w1"].astype(jnp.float32)
    w2 = params["w2"].astype(jnp.float32)
    wc = params["conv_w"].astype(jnp.float32)

    if out_dtype is None:
        out_dtype = img_feats.dtype

    # ---- tiling: big tiles amortize per-step overhead; no padding for
    #      ragged N (Pallas masks the partial last block; all ops row-local).
    num_cores = _num_tensorcores()
    tm = _choose_tm(N, tm, num_cores)
    n_tiles = pl.cdiv(N, tm)

    full = lambda i: (0, 0)   # whole-array params: same block every step

    img_bytes = jnp.dtype(img_feats.dtype).itemsize
    pt_bytes = jnp.dtype(point_feats.dtype).itemsize
    out_bytes = jnp.dtype(out_dtype).itemsize
    param_bytes = 4 * (2 * ic + ic * rc + pc * rc + 2 * rc + 1 + ic * pc + 2 * pc)
    cost = pl.CostEstimate(
        flops=2 * N * (ic * rc + pc * rc + ic * pc) + 8 * N * (rc + pc),
        transcendentals=N * (rc + 1),
        bytes_accessed=N * ic * img_bytes + N * pc * pt_bytes
        + N * pc * out_bytes + param_bytes,
    )

    out_pn = pl.pallas_call(
        ia_layer_kernel,
        out_shape=jax.ShapeDtypeStruct((pc, N), out_dtype),
        grid_spec=pltpu.PrefetchScalarGridSpec(
            num_scalar_prefetch=0,
            grid=(n_tiles,),
            in_specs=[
                pl.BlockSpec((tm, ic), lambda i: (i, 0)),   # img tile
                pl.BlockSpec((tm, pc), lambda i: (i, 0)),   # point tile
                pl.BlockSpec((1, ic), full),                # s1
                pl.BlockSpec((1, ic), full),                # t1
                pl.BlockSpec((ic, rc), full),               # w1
                pl.BlockSpec((pc, rc), full),               # w2
                pl.BlockSpec((1, rc), full),                # b1 + b2
                pl.BlockSpec((1, rc), full),                # w3 (as row)
                pl.BlockSpec(memory_space=pltpu.MemorySpace.SMEM),  # b3 scalar
                pl.BlockSpec((ic, pc), full),               # conv weight
                pl.BlockSpec((1, pc), full),                # sc
                pl.BlockSpec((1, pc), full),                # tc
            ],
            out_specs=pl.BlockSpec((pc, tm), lambda i: (0, i)),
        ),
        compiler_params=pltpu.CompilerParams(
            dimension_semantics=("parallel",),
            # tm=4096 f32 double-buffered working set ~10.5 MiB (+weights);
            # lift v5e's 16 MiB scoped-VMEM default out of the way.
            vmem_limit_bytes=32 * 1024 * 1024,
        ),
        cost_estimate=cost,
    )(img_feats, point_feats, s1, t1, w1, w2, b12, w3_row, b3, wc, sc, tc)

    return out_pn[None, :, :]           # (1, pc, N), matching PyTorch NCL


def _reference(img, pt, params, eps=1e-5):
    """Pure-JAX reference of the same eval-mode forward (f32)."""
    img = img.astype(jnp.float32)
    pt = pt.astype(jnp.float32)
    s1 = params["bn1_gamma"] / jnp.sqrt(params["bn1_var"] + eps)
    t1 = params["bn1_beta"] - params["bn1_mean"] * s1
    x = jnp.maximum(img * s1 + t1, 0.0)
    ri = x @ params["w1"] + params["b1"]
    rp = pt @ params["w2"] + params["b2"]
    att = jax.nn.sigmoid(jnp.tanh(ri + rp) @ params["w3"] + params["b3"])  # (N,1)
    y = img @ params["conv_w"] + params["conv_b"]
    sc = params["bnc_gamma"] / jnp.sqrt(params["bnc_var"] + eps)
    tc = params["bnc_beta"] - params["bnc_mean"] * sc
    y = jnp.maximum(y * sc + tc, 0.0)
    out = y * att                      # (N, pc)
    return jnp.transpose(out, (1, 0))[None, :, :]


if __name__ == "__main__":
    # channels = (ic, pc); rc = pc // 4  (matches IA_Layer([64, 128]))
    ic, pc = 64, 128
    rc = pc // 4

    key = jax.random.PRNGKey(0)
    keys = jax.random.split(key, 16)

    # Deterministic synthetic parameters (weights stored input-major: x @ W).
    params = {
        # fc1: BN(ic) -> ReLU -> Linear(ic, rc)
        "bn1_gamma": jax.random.normal(keys[2], (ic,)) * 0.1 + 1.0,
        "bn1_beta":  jax.random.normal(keys[3], (ic,)) * 0.1,
        "bn1_mean":  jax.random.normal(keys[4], (ic,)) * 0.1,
        "bn1_var":   jax.nn.softplus(jax.random.normal(keys[5], (ic,))) + 0.5,
        "w1": jax.random.normal(keys[6], (ic, rc)) * 0.05,
        "b1": jax.random.normal(keys[7], (rc,)) * 0.05,
        # fc2: Linear(pc, rc)
        "w2": jax.random.normal(keys[8], (pc, rc)) * 0.05,
        "b2": jax.random.normal(keys[9], (rc,)) * 0.05,
        # fc3: Linear(rc, 1)
        "w3": jax.random.normal(keys[10], (rc, 1)) * 0.05,
        "b3": jax.random.normal(keys[11], (1,)) * 0.05,
        # conv1: Conv1d(ic, pc, 1) -> BN(pc) -> ReLU
        "conv_w": jax.random.normal(keys[12], (ic, pc)) * 0.05,
        "conv_b": jax.random.normal(keys[13], (pc,)) * 0.05,
        "bnc_gamma": jax.random.normal(keys[14], (pc,)) * 0.1 + 1.0,
        "bnc_beta":  jax.random.normal(keys[15], (pc,)) * 0.1,
        "bnc_mean":  jnp.zeros((pc,), jnp.float32),
        "bnc_var":   jnp.ones((pc,), jnp.float32),
    }

    # f32 path: N=256 (single snug tile) and N=200 (ragged -> partial last
    # block, exercises the no-pad OOB-masked path).
    for N in (256, 200):
        img_feats = jax.random.normal(jax.random.fold_in(key, N), (N, ic),
                                      dtype=jnp.float32)
        point_feats = jax.random.normal(jax.random.fold_in(key, N + 1), (N, pc),
                                        dtype=jnp.float32)
        out = jax.block_until_ready(
            ia_layer_forward(img_feats, point_feats, params))
        assert out.shape == (1, pc, N), out.shape
        ref = _reference(img_feats, point_feats, params)
        assert jnp.allclose(out, ref, rtol=1e-3, atol=1e-3), float(
            jnp.max(jnp.abs(out - ref)))

    # bf16 OUTPUT path (f32 inputs, f32 math inside; only the streamed output
    # is bf16 -> removes ~28% of HBM bytes with no extra cast pass).
    N = 300
    img_feats = jax.random.normal(jax.random.fold_in(key, 7), (N, ic),
                                  dtype=jnp.float32)
    point_feats = jax.random.normal(jax.random.fold_in(key, 8), (N, pc),
                                    dtype=jnp.float32)
    out_bf16 = jax.block_until_ready(
        ia_layer_forward(img_feats, point_feats, params, out_dtype=jnp.bfloat16))
    assert out_bf16.shape == (1, pc, N), out_bf16.shape
    ref = _reference(img_feats, point_feats, params)
    assert jnp.allclose(out_bf16.astype(jnp.float32), ref,
                        rtol=2e-2, atol=2e-2), float(
        jnp.max(jnp.abs(out_bf16.astype(jnp.float32) - ref)))

    # Inputs already bf16 upstream: streamed as-is (no wrapper cast); math
    # still promotes to f32 inside the kernel.
    N = 256
    img_bf = jax.random.normal(jax.random.fold_in(key, 9), (N, ic),
                               dtype=jnp.float32).astype(jnp.bfloat16)
    pt_bf = jax.random.normal(jax.random.fold_in(key, 10), (N, pc),
                              dtype=jnp.float32).astype(jnp.bfloat16)
    out_b = jax.block_until_ready(ia_layer_forward(img_bf, pt_bf, params))
    ref_b = _reference(img_bf, pt_bf, params)   # same bf16-rounded inputs, f32 math
    assert out_b.shape == (1, pc, N), out_b.shape
    assert jnp.allclose(out_b.astype(jnp.float32), ref_b,
                        rtol=2e-2, atol=2e-2), float(
        jnp.max(jnp.abs(out_b.astype(jnp.float32) - ref_b)))

    print("KERNEL_OK")
</pallas_src>

<mosaic_0001>
module attributes {stable_mosaic.version = 11 : i64} {
  func.func @ia_layer_kernel(%arg0: i32, %arg1: memref<256x64xf32, #tpu.memory_space<vmem>>, %arg2: memref<256x128xf32, #tpu.memory_space<vmem>>, %arg3: memref<1x64xf32, #tpu.memory_space<vmem>>, %arg4: memref<1x64xf32, #tpu.memory_space<vmem>>, %arg5: memref<64x32xf32, #tpu.memory_space<vmem>>, %arg6: memref<128x32xf32, #tpu.memory_space<vmem>>, %arg7: memref<1x32xf32, #tpu.memory_space<vmem>>, %arg8: memref<1x32xf32, #tpu.memory_space<vmem>>, %arg9: memref<1xf32, #tpu.memory_space<smem>>, %arg10: memref<64x128xf32, #tpu.memory_space<vmem>>, %arg11: memref<1x128xf32, #tpu.memory_space<vmem>>, %arg12: memref<1x128xf32, #tpu.memory_space<vmem>>, %arg13: memref<128x256xf32, #tpu.memory_space<vmem>>) attributes {dimension_semantics = [#tpu.dimension_semantics<parallel>], iteration_bounds = array<i64: 1>, scalar_prefetch = 0 : i64, scratch_operands = 0 : i64, tpu.core_type = #tpu.core_type<tc>, window_params = [{transform_indices = @transform_0, window_bounds = array<i64: 256, 64>}, {transform_indices = @transform_1, window_bounds = array<i64: 256, 128>}, {pipeline_mode = #tpu.pipeline_mode<synchronous>, transform_indices = @transform_2, window_bounds = array<i64: 1, 64>}, {pipeline_mode = #tpu.pipeline_mode<synchronous>, transform_indices = @transform_3, window_bounds = array<i64: 1, 64>}, {pipeline_mode = #tpu.pipeline_mode<synchronous>, transform_indices = @transform_4, window_bounds = array<i64: 64, 32>}, {pipeline_mode = #tpu.pipeline_mode<synchronous>, transform_indices = @transform_5, window_bounds = array<i64: 128, 32>}, {pipeline_mode = #tpu.pipeline_mode<synchronous>, transform_indices = @transform_6, window_bounds = array<i64: 1, 32>}, {pipeline_mode = #tpu.pipeline_mode<synchronous>, transform_indices = @transform_7, window_bounds = array<i64: 1, 32>}, {transform_indices = @transform_8, window_bounds = array<i64: 1>}, {pipeline_mode = #tpu.pipeline_mode<synchronous>, transform_indices = @transform_9, window_bounds = array<i64: 64, 128>}, {pipeline_mode = #tpu.pipeline_mode<synchronous>, transform_indices = @transform_10, window_bounds = array<i64: 1, 128>}, {pipeline_mode = #tpu.pipeline_mode<synchronous>, transform_indices = @transform_11, window_bounds = array<i64: 1, 128>}, {transform_indices = @transform_12, window_bounds = array<i64: 128, 256>}]} {
    %c0 = arith.constant 0 : index
    %c0_0 = arith.constant 0 : index
    %0 = vector.load %arg1[%c0, %c0_0] : memref<256x64xf32, #tpu.memory_space<vmem>>, vector<256x64xf32>
    %c0_1 = arith.constant 0 : index
    %c0_2 = arith.constant 0 : index
    %1 = vector.load %arg2[%c0_1, %c0_2] : memref<256x128xf32, #tpu.memory_space<vmem>>, vector<256x128xf32>
    %c0_3 = arith.constant 0 : index
    %c0_4 = arith.constant 0 : index
    %2 = vector.load %arg3[%c0_3, %c0_4] : memref<1x64xf32, #tpu.memory_space<vmem>>, vector<1x64xf32>
    %3 = vector.broadcast %2 : vector<1x64xf32> to vector<256x64xf32>
    %4 = arith.mulf %0, %3 : vector<256x64xf32>
    %c0_5 = arith.constant 0 : index
    %c0_6 = arith.constant 0 : index
    %5 = vector.load %arg4[%c0_5, %c0_6] : memref<1x64xf32, #tpu.memory_space<vmem>>, vector<1x64xf32>
    %6 = vector.broadcast %5 : vector<1x64xf32> to vector<256x64xf32>
    %7 = arith.addf %4, %6 : vector<256x64xf32>
    %cst = arith.constant 0.000000e+00 : f32
    %8 = vector.broadcast %cst : f32 to vector<256x64xf32>
    %9 = arith.maximumf %7, %8 : vector<256x64xf32>
    %c0_7 = arith.constant 0 : index
    %c0_8 = arith.constant 0 : index
    %10 = vector.load %arg5[%c0_7, %c0_8] : memref<64x32xf32, #tpu.memory_space<vmem>>, vector<64x32xf32>
    %cst_9 = arith.constant dense<0.000000e+00> : vector<256x32xf32>
    %11 = tpu.matmul %9, %10, %cst_9 {dimension_numbers = #tpu.dot_dimension_numbers<[1], [0], [0], [1], [0, 0, 1, 1], [], []>} : vector<256x64xf32>, vector<64x32xf32>, vector<256x32xf32> -> vector<256x32xf32>
    %c0_10 = arith.constant 0 : index
    %c0_11 = arith.constant 0 : index
    %12 = vector.load %arg6[%c0_10, %c0_11] : memref<128x32xf32, #tpu.memory_space<vmem>>, vector<128x32xf32>
    %cst_12 = arith.constant dense<0.000000e+00> : vector<256x32xf32>
    %13 = tpu.matmul %1, %12, %cst_12 {dimension_numbers = #tpu.dot_dimension_numbers<[1], [0], [0], [1], [0, 0, 1, 1], [], []>} : vector<256x128xf32>, vector<128x32xf32>, vector<256x32xf32> -> vector<256x32xf32>
    %14 = arith.addf %11, %13 : vector<256x32xf32>
    %c0_13 = arith.constant 0 : index
    %c0_14 = arith.constant 0 : index
    %15 = vector.load %arg7[%c0_13, %c0_14] : memref<1x32xf32, #tpu.memory_space<vmem>>, vector<1x32xf32>
    %16 = vector.broadcast %15 : vector<1x32xf32> to vector<256x32xf32>
    %17 = arith.addf %14, %16 : vector<256x32xf32>
    %18 = math.tanh %17 : vector<256x32xf32>
    %c0_15 = arith.constant 0 : index
    %c0_16 = arith.constant 0 : index
    %19 = vector.load %arg8[%c0_15, %c0_16] : memref<1x32xf32, #tpu.memory_space<vmem>>, vector<1x32xf32>
    %20 = vector.broadcast %19 : vector<1x32xf32> to vector<256x32xf32>
    %21 = arith.mulf %18, %20 : vector<256x32xf32>
    %cst_17 = arith.constant dense<0.000000e+00> : vector<256xf32>
    %22 = vector.multi_reduction <add>, %21, %cst_17 [1] : vector<256x32xf32> to vector<256xf32>
    %23 = vector.shape_cast %22 : vector<256xf32> to vector<256x1xf32>
    %c0_18 = arith.constant 0 : index
    %24 = memref.load %arg9[%c0_18] : memref<1xf32, #tpu.memory_space<smem>>
    %25 = vector.broadcast %24 : f32 to vector<256x1xf32>
    %26 = arith.addf %23, %25 : vector<256x1xf32>
    %27 = arith.negf %26 : vector<256x1xf32>
    %28 = math.exp %27 : vector<256x1xf32>
    %cst_19 = arith.constant 1.000000e+00 : f32
    %29 = vector.broadcast %cst_19 : f32 to vector<256x1xf32>
    %30 = arith.addf %29, %28 : vector<256x1xf32>
    %31 = arith.divf %29, %30 : vector<256x1xf32>
    %c0_20 = arith.constant 0 : index
    %c0_21 = arith.constant 0 : index
    %32 = vector.load %arg10[%c0_20, %c0_21] : memref<64x128xf32, #tpu.memory_space<vmem>>, vector<64x128xf32>
    %cst_22 = arith.constant dense<0.000000e+00> : vector<256x128xf32>
    %33 = tpu.matmul %0, %32, %cst_22 {dimension_numbers = #tpu.dot_dimension_numbers<[1], [0], [0], [1], [0, 0, 1, 1], [], []>} : vector<256x64xf32>, vector<64x128xf32>, vector<256x128xf32> -> vector<256x128xf32>
    %c0_23 = arith.constant 0 : index
    %c0_24 = arith.constant 0 : index
    %34 = vector.load %arg11[%c0_23, %c0_24] : memref<1x128xf32, #tpu.memory_space<vmem>>, vector<1x128xf32>
    %35 = vector.broadcast %34 : vector<1x128xf32> to vector<256x128xf32>
    %36 = arith.mulf %33, %35 : vector<256x128xf32>
    %c0_25 = arith.constant 0 : index
    %c0_26 = arith.constant 0 : index
    %37 = vector.load %arg12[%c0_25, %c0_26] : memref<1x128xf32, #tpu.memory_space<vmem>>, vector<1x128xf32>
    %38 = vector.broadcast %37 : vector<1x128xf32> to vector<256x128xf32>
    %39 = arith.addf %36, %38 : vector<256x128xf32>
    %cst_27 = arith.constant 0.000000e+00 : f32
    %40 = vector.broadcast %cst_27 : f32 to vector<256x128xf32>
    %41 = arith.maximumf %39, %40 : vector<256x128xf32>
    %42 = vector.broadcast %31 : vector<256x1xf32> to vector<256x128xf32>
    %43 = arith.mulf %41, %42 : vector<256x128xf32>
    %44 = tpu.transpose %43, [1, 0] : vector<256x128xf32> -> vector<128x256xf32>
    %c0_28 = arith.constant 0 : index
    %c0_29 = arith.constant 0 : index
    %45 = vector.load %arg13[%c0_28, %c0_29] : memref<128x256xf32, #tpu.memory_space<vmem>>, vector<128x256xf32>
    tpu.vector_store %arg13[%c0_28, %c0_29], %44 {strides = array<i32>} : memref<128x256xf32, #tpu.memory_space<vmem>>, vector<128x256xf32>,
    return
  }
  func.func @transform_0(%arg0: i32) -> (i32, i32) {
    %c0_i32 = arith.constant 0 : i32
    %c0_i32_0 = arith.constant 0 : i32
    return %arg0, %c0_i32 : i32, i32
  }
  func.func @transform_1(%arg0: i32) -> (i32, i32) {
    %c0_i32 = arith.constant 0 : i32
    %c0_i32_0 = arith.constant 0 : i32
    return %arg0, %c0_i32 : i32, i32
  }
  func.func @transform_2(%arg0: i32) -> (i32, i32) {
    %c0_i32 = arith.constant 0 : i32
    %c0_i32_0 = arith.constant 0 : i32
    %c0_i32_1 = arith.constant 0 : i32
    return %c0_i32, %c0_i32_0 : i32, i32
  }
  func.func @transform_3(%arg0: i32) -> (i32, i32) {
    %c0_i32 = arith.constant 0 : i32
    %c0_i32_0 = arith.constant 0 : i32
    %c0_i32_1 = arith.constant 0 : i32
    return %c0_i32, %c0_i32_0 : i32, i32
  }
  func.func @transform_4(%arg0: i32) -> (i32, i32) {
    %c0_i32 = arith.constant 0 : i32
    %c0_i32_0 = arith.constant 0 : i32
    %c0_i32_1 = arith.constant 0 : i32
    return %c0_i32, %c0_i32_0 : i32, i32
  }
  func.func @transform_5(%arg0: i32) -> (i32, i32) {
    %c0_i32 = arith.constant 0 : i32
    %c0_i32_0 = arith.constant 0 : i32
    %c0_i32_1 = arith.constant 0 : i32
    return %c0_i32, %c0_i32_0 : i32, i32
  }
  func.func @transform_6(%arg0: i32) -> (i32, i32) {
    %c0_i32 = arith.constant 0 : i32
    %c0_i32_0 = arith.constant 0 : i32
    %c0_i32_1 = arith.constant 0 : i32
    return %c0_i32, %c0_i32_0 : i32, i32
  }
  func.func @transform_7(%arg0: i32) -> (i32, i32) {
    %c0_i32 = arith.constant 0 : i32
    %c0_i32_0 = arith.constant 0 : i32
    %c0_i32_1 = arith.constant 0 : i32
    return %c0_i32, %c0_i32_0 : i32, i32
  }
  func.func @transform_8(%arg0: i32) -> i32 {
    %c0_i32 = arith.constant 0 : i32
    %c0_i32_0 = arith.constant 0 : i32
    return %c0_i32 : i32
  }
  func.func @transform_9(%arg0: i32) -> (i32, i32) {
    %c0_i32 = arith.constant 0 : i32
    %c0_i32_0 = arith.constant 0 : i32
    %c0_i32_1 = arith.constant 0 : i32
    return %c0_i32, %c0_i32_0 : i32, i32
  }
  func.func @transform_10(%arg0: i32) -> (i32, i32) {
    %c0_i32 = arith.constant 0 : i32
    %c0_i32_0 = arith.constant 0 : i32
    %c0_i32_1 = arith.constant 0 : i32
    return %c0_i32, %c0_i32_0 : i32, i32
  }
  func.func @transform_11(%arg0: i32) -> (i32, i32) {
    %c0_i32 = arith.constant 0 : i32
    %c0_i32_0 = arith.constant 0 : i32
    %c0_i32_1 = arith.constant 0 : i32
    return %c0_i32, %c0_i32_0 : i32, i32
  }
  func.func @transform_12(%arg0: i32) -> (i32, i32) {
    %c0_i32 = arith.constant 0 : i32
    %c0_i32_0 = arith.constant 0 : i32
    return %c0_i32, %arg0 : i32, i32
  }
}

</mosaic_0001>

<llo_original>
// kernel: tpu_custom_call.1
$region0: #{tpu_custom_call.1}
  #allocation0 [shape = 'u32[]', space=smem, size = 0x4, offset = 0x4, fixed_abs, tag = 'smem constant byte address 0x4 - core index']
  #allocation1 [shape = 'u32[144,128]{1,0:T(1,128)}', space=vmem, size = 0x12000, scoped, tag = 'internal scratch']
  #allocation2 [shape = 'f32[1]{0:T(128)S(6)}', space=smem, size = 0x200, scoped, tag = 'scoped memory for tpu_custom_call.1']
  %s0 = inlined_call_operand.vmem [shape: f32[256,64], index: 0, kind: input, shape index: {}]
  %s1 = inlined_call_operand.vmem [shape: f32[256,128], index: 1, kind: input, shape index: {}]
  %s2 = inlined_call_operand.vmem [shape: f32[1,64], index: 2, kind: input, shape index: {}]
  %s3 = inlined_call_operand.vmem [shape: f32[1,64], index: 3, kind: input, shape index: {}]
  %s4 = inlined_call_operand.vmem [shape: f32[64,32], index: 4, kind: input, shape index: {}]
  %s5 = inlined_call_operand.vmem [shape: f32[128,32], index: 5, kind: input, shape index: {}]
  %s6 = inlined_call_operand.vmem [shape: f32[1,32], index: 6, kind: input, shape index: {}]
  %s7 = inlined_call_operand.vmem [shape: f32[1,32], index: 7, kind: input, shape index: {}]
  %s8 = inlined_call_operand.<no memory space> [shape: f32[1], index: 8, kind: input, shape index: {}]
  %s9 = inlined_call_operand.vmem [shape: f32[64,128], index: 9, kind: input, shape index: {}]
  %s10 = inlined_call_operand.vmem [shape: f32[1,128], index: 10, kind: input, shape index: {}]
  %s11 = inlined_call_operand.vmem [shape: f32[1,128], index: 11, kind: input, shape index: {}]
  %s12 = inlined_call_operand.hbm [shape: f32[128,256], index: 12, kind: output, shape index: {}]
  %s13 = sld [smem:[#allocation0]]
  $region58: #{tpu_custom_call.1} parent=0
    _
  %s15 = ssub.s32 1, %s13
  %s16 = scalar_select 0, %s15, %s13
  %17 = sst [smem:[#allocation2]] %s8
  $region1: #{tpu_custom_call.1} parent=0
    #allocation3 [shape = 'u8[131072]{0}', space=vmem, size = 0x20000, scoped, tag = 'output window, operand 0, single buffered']
    #allocation4 [shape = 's32[1]{0}', space=sflag, size = 0x4, scoped, tag = 'scoped memory for tpu_custom_call.1']
    %18 = vsyncpa [#allocation4], 0
    // Predicated region
    $region2: #{tpu_custom_call.1} parent=1 // pred_check
      _
    $region3: #{tpu_custom_call.1} parent=1 // pred_check_branch
      %20 = sbr.rel (0) target = $region5
    $region4: #{tpu_custom_call.1} parent=1 // pred_region
      _
    $region5: #{tpu_custom_call.1} parent=1 // pred_fallthru
      _
    // Predicated region
    $region6: #{tpu_custom_call.1} parent=1 // pred_check
      _
    $region7: #{tpu_custom_call.1} parent=1 // pred_check_branch
      %22 = sbr.rel (0) target = $region9
    $region8: #{tpu_custom_call.1} parent=1 // pred_region
      _
    $region9: #{tpu_custom_call.1} parent=1 // pred_fallthru
      _
    // Predicated region
    $region10: #{tpu_custom_call.1} parent=1 // pred_check
      _
    $region11: #{tpu_custom_call.1} parent=1 // pred_check_branch
      %24 = sbr.rel (0) target = $region13
    $region12: #{tpu_custom_call.1} parent=1 // pred_region
      _
    $region13: #{tpu_custom_call.1} parent=1 // pred_fallthru
      _
    // Predicated region
    $region14: #{tpu_custom_call.1} parent=1 // pred_check
      _
    $region15: #{tpu_custom_call.1} parent=1 // pred_check_branch
      %26 = sbr.rel (0) target = $region17
    $region16: #{tpu_custom_call.1} parent=1 // pred_region
      _
    $region17: #{tpu_custom_call.1} parent=1 // pred_fallthru
      _
    // Predicated region
    $region18: #{tpu_custom_call.1} parent=1 // pred_check
      _
    $region19: #{tpu_custom_call.1} parent=1 // pred_check_branch
      %28 = sbr.rel (0) target = $region21
    $region20: #{tpu_custom_call.1} parent=1 // pred_region
      _
    $region21: #{tpu_custom_call.1} parent=1 // pred_fallthru
      _
    // Predicated region
    $region22: #{tpu_custom_call.1} parent=1 // pred_check
      _
    $region23: #{tpu_custom_call.1} parent=1 // pred_check_branch
      %30 = sbr.rel (0) target = $region25
    $region24: #{tpu_custom_call.1} parent=1 // pred_region
      _
    $region25: #{tpu_custom_call.1} parent=1 // pred_fallthru
      _
    // Predicated region
    $region26: #{tpu_custom_call.1} parent=1 // pred_check
      _
    $region27: #{tpu_custom_call.1} parent=1 // pred_check_branch
      %32 = sbr.rel (0) target = $region29
    $region28: #{tpu_custom_call.1} parent=1 // pred_region
      _
    $region29: #{tpu_custom_call.1} parent=1 // pred_fallthru
      _
    // Predicated region
    $region30: #{tpu_custom_call.1} parent=1 // pred_check
      _
    $region31: #{tpu_custom_call.1} parent=1 // pred_check_branch
      %34 = sbr.rel (0) target = $region33
    $region32: #{tpu_custom_call.1} parent=1 // pred_region
      _
    $region33: #{tpu_custom_call.1} parent=1 // pred_fallthru
      _
    // Predicated region
    $region34: #{tpu_custom_call.1} parent=1 // pred_check
      _
    $region35: #{tpu_custom_call.1} parent=1 // pred_check_branch
      %36 = sbr.rel (0) target = $region37
    $region36: #{tpu_custom_call.1} parent=1 // pred_region
      _
    $region37: #{tpu_custom_call.1} parent=1 // pred_fallthru
      _
    // Predicated region
    $region38: #{tpu_custom_call.1} parent=1 // pred_check
      _
    $region39: #{tpu_custom_call.1} parent=1 // pred_check_branch
      %38 = sbr.rel (0) target = $region41
    $region40: #{tpu_custom_call.1} parent=1 // pred_region
      _
    $region41: #{tpu_custom_call.1} parent=1 // pred_fallthru
      _
    // Predicated region
    $region42: #{tpu_custom_call.1} parent=1 // pred_check
      _
    $region43: #{tpu_custom_call.1} parent=1 // pred_check_branch
      %40 = sbr.rel (0) target = $region45
    $region44: #{tpu_custom_call.1} parent=1 // pred_region
      _
    $region45: #{tpu_custom_call.1} parent=1 // pred_fallthru
      _
    // Predicated region
    $region46: #{tpu_custom_call.1} parent=1 // pred_check
      _
    $region47: #{tpu_custom_call.1} parent=1 // pred_check_branch
      %42 = sbr.rel (0) target = $region49
    $region48: #{tpu_custom_call.1} parent=1 // pred_region
      _
    $region49: #{tpu_custom_call.1} parent=1 // pred_fallthru
      _
    %v43 = vld [vmem:[%s0] sm:$0xff]
    %v44 = vld [vmem:[%s0 + $0x8] sm:$0xff]
    %v45 = vld [vmem:[%s0 + $0x10] sm:$0xff]
    %v46 = vld [vmem:[%s0 + $0x18] sm:$0xff]
    %v47 = vld [vmem:[%s0 + $0x20] sm:$0xff]
    %v48 = vld [vmem:[%s0 + $0x28] sm:$0xff]
    %v49 = vld [vmem:[%s0 + $0x30] sm:$0xff]
    %v50 = vld [vmem:[%s0 + $0x38] sm:$0xff]
    %v51 = vld [vmem:[%s0 + $0x40] sm:$0xff]
    %v52 = vld [vmem:[%s0 + $0x48] sm:$0xff]
    %v53 = vld [vmem:[%s0 + $0x50] sm:$0xff]
    %v54 = vld [vmem:[%s0 + $0x58] sm:$0xff]
    %v55 = vld [vmem:[%s0 + $0x60] sm:$0xff]
    %v56 = vld [vmem:[%s0 + $0x68] sm:$0xff]
    %v57 = vld [vmem:[%s0 + $0x70] sm:$0xff]
    %v58 = vld [vmem:[%s0 + $0x78] sm:$0xff]
    %v59 = vld [vmem:[%s0 + $0x80] sm:$0xff]
    %v60 = vld [vmem:[%s0 + $0x88] sm:$0xff]
    %v61 = vld [vmem:[%s0 + $0x90] sm:$0xff]
    %v62 = vld [vmem:[%s0 + $0x98] sm:$0xff]
    %v63 = vld [vmem:[%s0 + $0xa0] sm:$0xff]
    %v64 = vld [vmem:[%s0 + $0xa8] sm:$0xff]
    %v65 = vld [vmem:[%s0 + $0xb0] sm:$0xff]
    %v66 = vld [vmem:[%s0 + $0xb8] sm:$0xff]
    %v67 = vld [vmem:[%s0 + $0xc0] sm:$0xff]
    %v68 = vld [vmem:[%s0 + $0xc8] sm:$0xff]
    %v69 = vld [vmem:[%s0 + $0xd0] sm:$0xff]
    %v70 = vld [vmem:[%s0 + $0xd8] sm:$0xff]
    %v71 = vld [vmem:[%s0 + $0xe0] sm:$0xff]
    %v72 = vld [vmem:[%s0 + $0xe8] sm:$0xff]
    %v73 = vld [vmem:[%s0 + $0xf0] sm:$0xff]
    %v74 = vld [vmem:[%s0 + $0xf8] sm:$0xff]
    %v75 = vld [vmem:[%s1] sm:$0xff]
    %v76 = vld [vmem:[%s1 + $0x8] sm:$0xff]
    %v77 = vld [vmem:[%s1 + $0x10] sm:$0xff]
    %v78 = vld [vmem:[%s1 + $0x18] sm:$0xff]
    %v79 = vld [vmem:[%s1 + $0x20] sm:$0xff]
    %v80 = vld [vmem:[%s1 + $0x28] sm:$0xff]
    %v81 = vld [vmem:[%s1 + $0x30] sm:$0xff]
    %v82 = vld [vmem:[%s1 + $0x38] sm:$0xff]
    %v83 = vld [vmem:[%s1 + $0x40] sm:$0xff]
    %v84 = vld [vmem:[%s1 + $0x48] sm:$0xff]
    %v85 = vld [vmem:[%s1 + $0x50] sm:$0xff]
    %v86 = vld [vmem:[%s1 + $0x58] sm:$0xff]
    %v87 = vld [vmem:[%s1 + $0x60] sm:$0xff]
    %v88 = vld [vmem:[%s1 + $0x68] sm:$0xff]
    %v89 = vld [vmem:[%s1 + $0x70] sm:$0xff]
    %v90 = vld [vmem:[%s1 + $0x78] sm:$0xff]
    %v91 = vld [vmem:[%s1 + $0x80] sm:$0xff]
    %v92 = vld [vmem:[%s1 + $0x88] sm:$0xff]
    %v93 = vld [vmem:[%s1 + $0x90] sm:$0xff]
    %v94 = vld [vmem:[%s1 + $0x98] sm:$0xff]
    %v95 = vld [vmem:[%s1 + $0xa0] sm:$0xff]
    %v96 = vld [vmem:[%s1 + $0xa8] sm:$0xff]
    %v97 = vld [vmem:[%s1 + $0xb0] sm:$0xff]
    %v98 = vld [vmem:[%s1 + $0xb8] sm:$0xff]
    %v99 = vld [vmem:[%s1 + $0xc0] sm:$0xff]
    %v100 = vld [vmem:[%s1 + $0xc8] sm:$0xff]
    %v101 = vld [vmem:[%s1 + $0xd0] sm:$0xff]
    %v102 = vld [vmem:[%s1 + $0xd8] sm:$0xff]
    %v103 = vld [vmem:[%s1 + $0xe0] sm:$0xff]
    %v104 = vld [vmem:[%s1 + $0xe8] sm:$0xff]
    %v105 = vld [vmem:[%s1 + $0xf0] sm:$0xff]
    %v106 = vld [vmem:[%s1 + $0xf8] sm:$0xff]
    %v107 = vld [vmem:[%s2] sm:$0x1]
    %v109 = vlaneseq
    %v110 = vshrl.u32 %v109, 7
    %v111 = vsub.s32 0, %v110
    %v112 = vrot.slane %v107, %v111
    %v114 = vmul.f32 %v43, %v112
    %v115 = vmul.f32 %v44, %v112
    %v116 = vmul.f32 %v45, %v112
    %v117 = vmul.f32 %v46, %v112
    %v118 = vmul.f32 %v47, %v112
    %v119 = vmul.f32 %v48, %v112
    %v120 = vmul.f32 %v49, %v112
    %v121 = vmul.f32 %v50, %v112
    %v122 = vmul.f32 %v51, %v112
    %v123 = vmul.f32 %v52, %v112
    %v124 = vmul.f32 %v53, %v112
    %v125 = vmul.f32 %v54, %v112
    %v126 = vmul.f32 %v55, %v112
    %v127 = vmul.f32 %v56, %v112
    %v128 = vmul.f32 %v57, %v112
    %v129 = vmul.f32 %v58, %v112
    %v130 = vmul.f32 %v59, %v112
    %v131 = vmul.f32 %v60, %v112
    %v132 = vmul.f32 %v61, %v112
    %v133 = vmul.f32 %v62, %v112
    %v134 = vmul.f32 %v63, %v112
    %v135 = vmul.f32 %v64, %v112
    %v136 = vmul.f32 %v65, %v112
    %v137 = vmul.f32 %v66, %v112
    %v138 = vmul.f32 %v67, %v112
    %v139 = vmul.f32 %v68, %v112
    %v140 = vmul.f32 %v69, %v112
    %v141 = vmul.f32 %v70, %v112
    %v142 = vmul.f32 %v71, %v112
    %v143 = vmul.f32 %v72, %v112
    %v144 = vmul.f32 %v73, %v112
    %v145 = vmul.f32 %v74, %v112
    %v146 = vld [vmem:[%s3] sm:$0x1]
    %v148 = vlaneseq
    %v149 = vshrl.u32 %v148, 7
    %v150 = vsub.s32 0, %v149
    %v151 = vrot.slane %v146, %v150
    %v153 = vadd.f32 %v114, %v151
    %v154 = vadd.f32 %v115, %v151
    %v155 = vadd.f32 %v116, %v151
    %v156 = vadd.f32 %v117, %v151
    %v157 = vadd.f32 %v118, %v151
    %v158 = vadd.f32 %v119, %v151
    %v159 = vadd.f32 %v120, %v151
    %v160 = vadd.f32 %v121, %v151
    %v161 = vadd.f32 %v122, %v151
    %v162 = vadd.f32 %v123, %v151
    %v163 = vadd.f32 %v124, %v151
    %v164 = vadd.f32 %v125, %v151
    %v165 = vadd.f32 %v126, %v151
    %v166 = vadd.f32 %v127, %v151
    %v167 = vadd.f32 %v128, %v151
    %v168 = vadd.f32 %v129, %v151
    %v169 = vadd.f32 %v130, %v151
    %v170 = vadd.f32 %v131, %v151
    %v171 = vadd.f32 %v132, %v151
    %v172 = vadd.f32 %v133, %v151
    %v173 = vadd.f32 %v134, %v151
    %v174 = vadd.f32 %v135, %v151
    %v175 = vadd.f32 %v136, %v151
    %v176 = vadd.f32 %v137, %v151
    %v177 = vadd.f32 %v138, %v151
    %v178 = vadd.f32 %v139, %v151
    %v179 = vadd.f32 %v140, %v151
    %v180 = vadd.f32 %v141, %v151
    %v181 = vadd.f32 %v142, %v151
    %v182 = vadd.f32 %v143, %v151
    %v183 = vadd.f32 %v144, %v151
    %v184 = vadd.f32 %v145, %v151
    %v185 = vmax.f32 %v153, 0.0
    %v186 = vmax.f32 %v154, 0.0
    %v187 = vmax.f32 %v155, 0.0
    %v188 = vmax.f32 %v156, 0.0
    %v189 = vmax.f32 %v157, 0.0
    %v190 = vmax.f32 %v158, 0.0
    %v191 = vmax.f32 %v159, 0.0
    %v192 = vmax.f32 %v160, 0.0
    %v193 = vmax.f32 %v161, 0.0
    %v194 = vmax.f32 %v162, 0.0
    %v195 = vmax.f32 %v163, 0.0
    %v196 = vmax.f32 %v164, 0.0
    %v197 = vmax.f32 %v165, 0.0
    %v198 = vmax.f32 %v166, 0.0
    %v199 = vmax.f32 %v167, 0.0
    %v200 = vmax.f32 %v168, 0.0
    %v201 = vmax.f32 %v169, 0.0
    %v202 = vmax.f32 %v170, 0.0
    %v203 = vmax.f32 %v171, 0.0
    %v204 = vmax.f32 %v172, 0.0
    %v205 = vmax.f32 %v173, 0.0
    %v206 = vmax.f32 %v174, 0.0
    %v207 = vmax.f32 %v175, 0.0
    %v208 = vmax.f32 %v176, 0.0
    %v209 = vmax.f32 %v177, 0.0
    %v210 = vmax.f32 %v178, 0.0
    %v211 = vmax.f32 %v179, 0.0
    %v212 = vmax.f32 %v180, 0.0
    %v213 = vmax.f32 %v181, 0.0
    %v214 = vmax.f32 %v182, 0.0
    %v215 = vmax.f32 %v183, 0.0
    %v216 = vmax.f32 %v184, 0.0
    %v217 = vld [vmem:[%s4] sm:$0xff]
    %v218 = vld [vmem:[%s4 + $0x8] sm:$0xff]
    %v219 = vld [vmem:[%s4 + $0x10] sm:$0xff]
    %v220 = vld [vmem:[%s4 + $0x18] sm:$0xff]
    %v221 = vld [vmem:[%s4 + $0x20] sm:$0xff]
    %v222 = vld [vmem:[%s4 + $0x28] sm:$0xff]
    %v223 = vld [vmem:[%s4 + $0x30] sm:$0xff]
    %v224 = vld [vmem:[%s4 + $0x38] sm:$0xff]
    %v225 = vld [vmem:[%s5] sm:$0xff]
    %v226 = vld [vmem:[%s5 + $0x8] sm:$0xff]
    %v227 = vld [vmem:[%s5 + $0x10] sm:$0xff]
    %v228 = vld [vmem:[%s5 + $0x18] sm:$0xff]
    %v229 = vld [vmem:[%s5 + $0x20] sm:$0xff]
    %v230 = vld [vmem:[%s5 + $0x28] sm:$0xff]
    %v231 = vld [vmem:[%s5 + $0x30] sm:$0xff]
    %v232 = vld [vmem:[%s5 + $0x38] sm:$0xff]
    %v233 = vld [vmem:[%s5 + $0x40] sm:$0xff]
    %v234 = vld [vmem:[%s5 + $0x48] sm:$0xff]
    %v235 = vld [vmem:[%s5 + $0x50] sm:$0xff]
    %v236 = vld [vmem:[%s5 + $0x58] sm:$0xff]
    %v237 = vld [vmem:[%s5 + $0x60] sm:$0xff]
    %v238 = vld [vmem:[%s5 + $0x68] sm:$0xff]
    %v239 = vld [vmem:[%s5 + $0x70] sm:$0xff]
    %v240 = vld [vmem:[%s5 + $0x78] sm:$0xff]
    %241 = vmatprep.subr.mxu0 0.0
    %242 = vmatpush1.msra.mxu0 %v225
    %243 = vmatprep.subr.mxu0 0.0
    %244 = vmatpush1.msra.mxu0 %v226
    %245 = vmatprep.subr.mxu0 0.0
    %246 = vmatpush1.msra.mxu0 %v227
    %247 = vmatprep.subr.mxu0 0.0
    %248 = vmatpush1.msra.mxu0 %v228
    %249 = vmatprep.subr.mxu0 0.0
    %250 = vmatpush1.msra.mxu0 %v229
    %251 = vmatprep.subr.mxu0 0.0
    %252 = vmatpush1.msra.mxu0 %v230
    %253 = vmatprep.subr.mxu0 0.0
    %254 = vmatpush1.msra.mxu0 %v231
    %255 = vmatprep.subr.mxu0 0.0
    %256 = vmatpush1.msra.mxu0 %v232
    %257 = vmatprep.subr.mxu0 0.0
    %258 = vmatpush1.msra.mxu0 %v233
    %259 = vmatprep.subr.mxu0 0.0
    %260 = vmatpush1.msra.mxu0 %v234
    %261 = vmatprep.subr.mxu0 0.0
    %262 = vmatpush1.msra.mxu0 %v235
    %263 = vmatprep.subr.mxu0 0.0
    %264 = vmatpush1.msra.mxu0 %v236
    %265 = vmatprep.subr.mxu0 0.0
    %266 = vmatpush1.msra.mxu0 %v237
    %267 = vmatprep.subr.mxu0 0.0
    %268 = vmatpush1.msra.mxu0 %v238
    %269 = vmatprep.subr.mxu0 0.0
    %270 = vmatpush1.msra.mxu0 %v239
    %271 = vmatprep.subr.mxu0 0.0
    %272 = vmatpush1.msra.mxu0 %v240
    %273 = vmatprep.subr.mxu0 0.0
    %274 = vmatpush1.msra.mxu0 0.0
    %275 = vmatprep.subr.mxu0 0.0
    %276 = vmatpush1.msra.mxu0 0.0
    %277 = vmatprep.subr.mxu0 0.0
    %278 = vmatpush1.msra.mxu0 0.0
    %279 = vmatprep.subr.mxu0 0.0
    %280 = vmatpush1.msra.mxu0 0.0
    %281 = vmatprep.subr.mxu0 0.0
    %282 = vmatpush1.msra.mxu0 0.0
    %283 = vmatprep.subr.mxu0 0.0
    %284 = vmatpush1.msra.mxu0 0.0
    %285 = vmatprep.subr.mxu0 0.0
    %286 = vmatpush1.msra.mxu0 0.0
    %287 = vmatprep.subr.mxu0 0.0
    %288 = vmatpush1.msra.mxu0 0.0
    %289 = vmatprep.subr.mxu0 0.0
    %290 = vmatpush1.msra.mxu0 0.0
    %291 = vmatprep.subr.mxu0 0.0
    %292 = vmatpush1.msra.mxu0 0.0
    %293 = vmatprep.subr.mxu0 0.0
    %294 = vmatpush1.msra.mxu0 0.0
    %295 = vmatprep.subr.mxu0 0.0
    %296 = vmatpush1.msra.mxu0 0.0
    %297 = vmatprep.subr.mxu0 0.0
    %298 = vmatpush1.msra.mxu0 0.0
    %299 = vmatprep.subr.mxu0 0.0
    %300 = vmatpush1.msra.mxu0 0.0
    %301 = vmatprep.subr.mxu0 0.0
    %302 = vmatpush1.msra.mxu0 0.0
    %303 = vmatprep.subr.mxu0 0.0
    %304 = vmatpush1.msra.mxu0 0.0
    %305 = vmatprep.mubr.f32.mxu0 0.0
    %306 = vmatmul.mubr.f32.gmra.mrb[0].mxu0 %v75
    %v307 = vpop.f32.mrb[0].mxu0
    %v308 = vadd.f32 0.0, %v307
    %v309 = vpop.f32.mrb[0].mxu0
    %310 = vmatprep.mubr.f32.mxu0 0.0
    %311 = vmatmul.mubr.f32.gmra.mrb[0].mxu0 %v76
    %v312 = vpop.f32.mrb[0].mxu0
    %v313 = vadd.f32 0.0, %v312
    %v314 = vpop.f32.mrb[0].mxu0
    %315 = vmatprep.mubr.f32.mxu0 0.0
    %316 = vmatmul.mubr.f32.gmra.mrb[0].mxu0 %v77
    %v317 = vpop.f32.mrb[0].mxu0
    %v318 = vadd.f32 0.0, %v317
    %v319 = vpop.f32.mrb[0].mxu0
    %320 = vmatprep.mubr.f32.mxu0 0.0
    %321 = vmatmul.mubr.f32.gmra.mrb[0].mxu0 %v78
    %v322 = vpop.f32.mrb[0].mxu0
    %v323 = vadd.f32 0.0, %v322
    %v324 = vpop.f32.mrb[0].mxu0
    %325 = vmatprep.mubr.f32.mxu0 0.0
    %326 = vmatmul.mubr.f32.gmra.mrb[0].mxu0 %v79
    %v327 = vpop.f32.mrb[0].mxu0
    %v328 = vadd.f32 0.0, %v327
    %v329 = vpop.f32.mrb[0].mxu0
    %330 = vmatprep.mubr.f32.mxu0 0.0
    %331 = vmatmul.mubr.f32.gmra.mrb[0].mxu0 %v80
    %v332 = vpop.f32.mrb[0].mxu0
    %v333 = vadd.f32 0.0, %v332
    %v334 = vpop.f32.mrb[0].mxu0
    %335 = vmatprep.mubr.f32.mxu0 0.0
    %336 = vmatmul.mubr.f32.gmra.mrb[0].mxu0 %v81
    %v337 = vpop.f32.mrb[0].mxu0
    %v338 = vadd.f32 0.0, %v337
    %v339 = vpop.f32.mrb[0].mxu0
    %340 = vmatprep.mubr.f32.mxu0 0.0
    %341 = vmatmul.mubr.f32.gmra.mrb[0].mxu0 %v82
    %v342 = vpop.f32.mrb[0].mxu0
    %v343 = vadd.f32 0.0, %v342
    %v344 = vpop.f32.mrb[0].mxu0
    %345 = vmatprep.mubr.f32.mxu0 0.0
    %346 = vmatmul.mubr.f32.gmra.mrb[0].mxu0 %v83
    %v347 = vpop.f32.mrb[0].mxu0
    %v348 = vadd.f32 0.0, %v347
    %v349 = vpop.f32.mrb[0].mxu0
    %350 = vmatprep.mubr.f32.mxu0 0.0
    %351 = vmatmul.mubr.f32.gmra.mrb[0].mxu0 %v84
    %v352 = vpop.f32.mrb[0].mxu0
    %v353 = vadd.f32 0.0, %v352
    %v354 = vpop.f32.mrb[0].mxu0
    %355 = vmatprep.mubr.f32.mxu0 0.0
    %356 = vmatmul.mubr.f32.gmra.mrb[0].mxu0 %v85
    %v357 = vpop.f32.mrb[0].mxu0
    %v358 = vadd.f32 0.0, %v357
    %v359 = vpop.f32.mrb[0].mxu0
    %360 = vmatprep.mubr.f32.mxu0 0.0
    %361 = vmatmul.mubr.f32.gmra.mrb[0].mxu0 %v86
    %v362 = vpop.f32.mrb[0].mxu0
    %v363 = vadd.f32 0.0, %v362
    %v364 = vpop.f32.mrb[0].mxu0
    %365 = vmatprep.mubr.f32.mxu0 0.0
    %366 = vmatmul.mubr.f32.gmra.mrb[0].mxu0 %v87
    %v367 = vpop.f32.mrb[0].mxu0
    %v368 = vadd.f32 0.0, %v367
    %v369 = vpop.f32.mrb[0].mxu0
    %370 = vmatprep.mubr.f32.mxu0 0.0
    %371 = vmatmul.mubr.f32.gmra.mrb[0].mxu0 %v88
    %v372 = vpop.f32.mrb[0].mxu0
    %v373 = vadd.f32 0.0, %v372
    %v374 = vpop.f32.mrb[0].mxu0
    %375 = vmatprep.mubr.f32.mxu0 0.0
    %376 = vmatmul.mubr.f32.gmra.mrb[0].mxu0 %v89
    %v377 = vpop.f32.mrb[0].mxu0
    %v378 = vadd.f32 0.0, %v377
    %v379 = vpop.f32.mrb[0].mxu0
    %380 = vmatprep.mubr.f32.mxu0 0.0
    %381 = vmatmul.mubr.f32.gmra.mrb[0].mxu0 %v90
    %v382 = vpop.f32.mrb[0].mxu0
    %v383 = vadd.f32 0.0, %v382
    %v384 = vpop.f32.mrb[0].mxu0
    %385 = vmatprep.mubr.f32.mxu0 0.0
    %386 = vmatmul.mubr.f32.gmra.mrb[0].mxu0 %v91
    %v387 = vpop.f32.mrb[0].mxu0
    %v388 = vadd.f32 0.0, %v387
    %v389 = vpop.f32.mrb[0].mxu0
    %390 = vmatprep.mubr.f32.mxu0 0.0
    %391 = vmatmul.mubr.f32.gmra.mrb[0].mxu0 %v92
    %v392 = vpop.f32.mrb[0].mxu0
    %v393 = vadd.f32 0.0, %v392
    %v394 = vpop.f32.mrb[0].mxu0
    %395 = vmatprep.mubr.f32.mxu0 0.0
    %396 = vmatmul.mubr.f32.gmra.mrb[0].mxu0 %v93
    %v397 = vpop.f32.mrb[0].mxu0
    %v398 = vadd.f32 0.0, %v397
    %v399 = vpop.f32.mrb[0].mxu0
    %400 = vmatprep.mubr.f32.mxu0 0.0
    %401 = vmatmul.mubr.f32.gmra.mrb[0].mxu0 %v94
    %v402 = vpop.f32.mrb[0].mxu0
    %v403 = vadd.f32 0.0, %v402
    %v404 = vpop.f32.mrb[0].mxu0
    %405 = vmatprep.mubr.f32.mxu0 0.0
    %406 = vmatmul.mubr.f32.gmra.mrb[0].mxu0 %v95
    %v407 = vpop.f32.mrb[0].mxu0
    %v408 = vadd.f32 0.0, %v407
    %v409 = vpop.f32.mrb[0].mxu0
    %410 = vmatprep.mubr.f32.mxu0 0.0
    %411 = vmatmul.mubr.f32.gmra.mrb[0].mxu0 %v96
    %v412 = vpop.f32.mrb[0].mxu0
    %v413 = vadd.f32 0.0, %v412
    %v414 = vpop.f32.mrb[0].mxu0
    %415 = vmatprep.mubr.f32.mxu0 0.0
    %416 = vmatmul.mubr.f32.gmra.mrb[0].mxu0 %v97
    %v417 = vpop.f32.mrb[0].mxu0
    %v418 = vadd.f32 0.0, %v417
    %v419 = vpop.f32.mrb[0].mxu0
    %420 = vmatprep.mubr.f32.mxu0 0.0
    %421 = vmatmul.mubr.f32.gmra.mrb[0].mxu0 %v98
    %v422 = vpop.f32.mrb[0].mxu0
    %v423 = vadd.f32 0.0, %v422
    %v424 = vpop.f32.mrb[0].mxu0
    %425 = vmatprep.mubr.f32.mxu0 0.0
    %426 = vmatmul.mubr.f32.gmra.mrb[0].mxu0 %v99
    %v427 = vpop.f32.mrb[0].mxu0
    %v428 = vadd.f32 0.0, %v427
    %v429 = vpop.f32.mrb[0].mxu0
    %430 = vmatprep.mubr.f32.mxu0 0.0
    %431 = vmatmul.mubr.f32.gmra.mrb[0].mxu0 %v100
    %v432 = vpop.f32.mrb[0].mxu0
    %v433 = vadd.f32 0.0, %v432
    %v434 = vpop.f32.mrb[0].mxu0
    %435 = vmatprep.mubr.f32.mxu0 0.0
    %436 = vmatmul.mubr.f32.gmra.mrb[0].mxu0 %v101
    %v437 = vpop.f32.mrb[0].mxu0
    %v438 = vadd.f32 0.0, %v437
    %v439 = vpop.f32.mrb[0].mxu0
    %440 = vmatprep.mubr.f32.mxu0 0.0
    %441 = vmatmul.mubr.f32.gmra.mrb[0].mxu0 %v102
    %v442 = vpop.f32.mrb[0].mxu0
    %v443 = vadd.f32 0.0, %v442
    %v444 = vpop.f32.mrb[0].mxu0
    %445 = vmatprep.mubr.f32.mxu0 0.0
    %446 = vmatmul.mubr.f32.gmra.mrb[0].mxu0 %v103
    %v447 = vpop.f32.mrb[0].mxu0
    %v448 = vadd.f32 0.0, %v447
    %v449 = vpop.f32.mrb[0].mxu0
    %450 = vmatprep.mubr.f32.mxu0 0.0
    %451 = vmatmul.mubr.f32.gmra.mrb[0].mxu0 %v104
    %v452 = vpop.f32.mrb[0].mxu0
    %v453 = vadd.f32 0.0, %v452
    %v454 = vpop.f32.mrb[0].mxu0
    %455 = vmatprep.mubr.f32.mxu0 0.0
    %456 = vmatmul.mubr.f32.gmra.mrb[0].mxu0 %v105
    %v457 = vpop.f32.mrb[0].mxu0
    %v458 = vadd.f32 0.0, %v457
    %v459 = vpop.f32.mrb[0].mxu0
    %460 = vmatprep.mubr.f32.mxu0 0.0
    %461 = vmatmul.mubr.f32.gmra.mrb[0].mxu0 %v106
    %v462 = vpop.f32.mrb[0].mxu0
    %v463 = vadd.f32 0.0, %v462
    %v464 = vpop.f32.mrb[0].mxu0
    %465 = vdwg.mxu0
    %vm466 = vcmask 523264
    %v468 = vsel %vm466, %v185, 0
    %v471 = vsel %vm466, %v186, 0
    %v474 = vsel %vm466, %v187, 0
    %v477 = vsel %vm466, %v188, 0
    %v480 = vsel %vm466, %v189, 0
    %v483 = vsel %vm466, %v190, 0
    %v486 = vsel %vm466, %v191, 0
    %v489 = vsel %vm466, %v192, 0
    %v492 = vsel %vm466, %v193, 0
    %v495 = vsel %vm466, %v194, 0
    %v498 = vsel %vm466, %v195, 0
    %v501 = vsel %vm466, %v196, 0
    %v504 = vsel %vm466, %v197, 0
    %v507 = vsel %vm466, %v198, 0
    %v510 = vsel %vm466, %v199, 0
    %v513 = vsel %vm466, %v200, 0
    %v516 = vsel %vm466, %v201, 0
    %v519 = vsel %vm466, %v202, 0
    %v522 = vsel %vm466, %v203, 0
    %v525 = vsel %vm466, %v204, 0
    %v528 = vsel %vm466, %v205, 0
    %v531 = vsel %vm466, %v206, 0
    %v534 = vsel %vm466, %v207, 0
    %v537 = vsel %vm466, %v208, 0
    %v540 = vsel %vm466, %v209, 0
    %v543 = vsel %vm466, %v210, 0
    %v546 = vsel %vm466, %v211, 0
    %v549 = vsel %vm466, %v212, 0
    %v552 = vsel %vm466, %v213, 0
    %v555 = vsel %vm466, %v214, 0
    %v558 = vsel %vm466, %v215, 0
    %v561 = vsel %vm466, %v216, 0
    %563 = vmatprep.subr.mxu0 0.0
    %564 = vmatpush1.msra.mxu0 %v217
    %565 = vmatprep.subr.mxu0 0.0
    %566 = vmatpush1.msra.mxu0 %v218
    %567 = vmatprep.subr.mxu0 0.0
    %568 = vmatpush1.msra.mxu0 %v219
    %569 = vmatprep.subr.mxu0 0.0
    %570 = vmatpush1.msra.mxu0 %v220
    %571 = vmatprep.subr.mxu0 0.0
    %572 = vmatpush1.msra.mxu0 %v221
    %573 = vmatprep.subr.mxu0 0.0
    %574 = vmatpush1.msra.mxu0 %v222
    %575 = vmatprep.subr.mxu0 0.0
    %576 = vmatpush1.msra.mxu0 %v223
    %577 = vmatprep.subr.mxu0 0.0
    %578 = vmatpush1.msra.mxu0 %v224
    %579 = vmatprep.subr.mxu0 0.0
    %580 = vmatpush1.msra.mxu0 0.0
    %581 = vmatprep.subr.mxu0 0.0
    %582 = vmatpush1.msra.mxu0 0.0
    %583 = vmatprep.subr.mxu0 0.0
    %584 = vmatpush1.msra.mxu0 0.0
    %585 = vmatprep.subr.mxu0 0.0
    %586 = vmatpush1.msra.mxu0 0.0
    %587 = vmatprep.subr.mxu0 0.0
    %588 = vmatpush1.msra.mxu0 0.0
    %589 = vmatprep.subr.mxu0 0.0
    %590 = vmatpush1.msra.mxu0 0.0
    %591 = vmatprep.subr.mxu0 0.0
    %592 = vmatpush1.msra.mxu0 0.0
    %593 = vmatprep.subr.mxu0 0.0
    %594 = vmatpush1.msra.mxu0 0.0
    %595 = vmatprep.subr.mxu0 0.0
    %596 = vmatpush1.msra.mxu0 0.0
    %597 = vmatprep.subr.mxu0 0.0
    %598 = vmatpush1.msra.mxu0 0.0
    %599 = vmatprep.subr.mxu0 0.0
    %600 = vmatpush1.msra.mxu0 0.0
    %601 = vmatprep.subr.mxu0 0.0
    %602 = vmatpush1.msra.mxu0 0.0
    %603 = vmatprep.subr.mxu0 0.0
    %604 = vmatpush1.msra.mxu0 0.0
    %605 = vmatprep.subr.mxu0 0.0
    %606 = vmatpush1.msra.mxu0 0.0
    %607 = vmatprep.subr.mxu0 0.0
    %608 = vmatpush1.msra.mxu0 0.0
    %609 = vmatprep.subr.mxu0 0.0
    %610 = vmatpush1.msra.mxu0 0.0
    %611 = vmatprep.subr.mxu0 0.0
    %612 = vmatpush1.msra.mxu0 0.0
    %613 = vmatprep.subr.mxu0 0.0
    %614 = vmatpush1.msra.mxu0 0.0
    %615 = vmatprep.subr.mxu0 0.0
    %616 = vmatpush1.msra.mxu0 0.0
    %617 = vmatprep.subr.mxu0 0.0
    %618 = vmatpush1.msra.mxu0 0.0
    %619 = vmatprep.subr.mxu0 0.0
    %620 = vmatpush1.msra.mxu0 0.0
    %621 = vmatprep.subr.mxu0 0.0
    %622 = vmatpush1.msra.mxu0 0.0
    %623 = vmatprep.subr.mxu0 0.0
    %624 = vmatpush1.msra.mxu0 0.0
    %625 = vmatprep.subr.mxu0 0.0
    %626 = vmatpush1.msra.mxu0 0.0
    %627 = vmatprep.mubr.f32.mxu0 0.0
    %628 = vmatmul.mubr.f32.gmra.mrb[0].mxu0 %v468
    %v629 = vpop.f32.mrb[0].mxu0
    %v630 = vadd.f32 %v308, %v629
    %v631 = vpop.f32.mrb[0].mxu0
    %632 = vmatprep.mubr.f32.mxu0 0.0
    %633 = vmatmul.mubr.f32.gmra.mrb[0].mxu0 %v471
    %v634 = vpop.f32.mrb[0].mxu0
    %v635 = vadd.f32 %v313, %v634
    %v636 = vpop.f32.mrb[0].mxu0
    %637 = vmatprep.mubr.f32.mxu0 0.0
    %638 = vmatmul.mubr.f32.gmra.mrb[0].mxu0 %v474
    %v639 = vpop.f32.mrb[0].mxu0
    %v640 = vadd.f32 %v318, %v639
    %v641 = vpop.f32.mrb[0].mxu0
    %642 = vmatprep.mubr.f32.mxu0 0.0
    %643 = vmatmul.mubr.f32.gmra.mrb[0].mxu0 %v477
    %v644 = vpop.f32.mrb[0].mxu0
    %v645 = vadd.f32 %v323, %v644
    %v646 = vpop.f32.mrb[0].mxu0
    %647 = vmatprep.mubr.f32.mxu0 0.0
    %648 = vmatmul.mubr.f32.gmra.mrb[0].mxu0 %v480
    %v649 = vpop.f32.mrb[0].mxu0
    %v650 = vadd.f32 %v328, %v649
    %v651 = vpop.f32.mrb[0].mxu0
    %652 = vmatprep.mubr.f32.mxu0 0.0
    %653 = vmatmul.mubr.f32.gmra.mrb[0].mxu0 %v483
    %v654 = vpop.f32.mrb[0].mxu0
    %v655 = vadd.f32 %v333, %v654
    %v656 = vpop.f32.mrb[0].mxu0
    %657 = vmatprep.mubr.f32.mxu0 0.0
    %658 = vmatmul.mubr.f32.gmra.mrb[0].mxu0 %v486
    %v659 = vpop.f32.mrb[0].mxu0
    %v660 = vadd.f32 %v338, %v659
    %v661 = vpop.f32.mrb[0].mxu0
    %662 = vmatprep.mubr.f32.mxu0 0.0
    %663 = vmatmul.mubr.f32.gmra.mrb[0].mxu0 %v489
    %v664 = vpop.f32.mrb[0].mxu0
    %v665 = vadd.f32 %v343, %v664
    %v666 = vpop.f32.mrb[0].mxu0
    %667 = vmatprep.mubr.f32.mxu0 0.0
    %668 = vmatmul.mubr.f32.gmra.mrb[0].mxu0 %v492
    %v669 = vpop.f32.mrb[0].mxu0
    %v670 = vadd.f32 %v348, %v669
    %v671 = vpop.f32.mrb[0].mxu0
    %672 = vmatprep.mubr.f32.mxu0 0.0
    %673 = vmatmul.mubr.f32.gmra.mrb[0].mxu0 %v495
    %v674 = vpop.f32.mrb[0].mxu0
    %v675 = vadd.f32 %v353, %v674
    %v676 = vpop.f32.mrb[0].mxu0
    %677 = vmatprep.mubr.f32.mxu0 0.0
    %678 = vmatmul.mubr.f32.gmra.mrb[0].mxu0 %v498
    %v679 = vpop.f32.mrb[0].mxu0
    %v680 = vadd.f32 %v358, %v679
    %v681 = vpop.f32.mrb[0].mxu0
    %682 = vmatprep.mubr.f32.mxu0 0.0
    %683 = vmatmul.mubr.f32.gmra.mrb[0].mxu0 %v501
    %v684 = vpop.f32.mrb[0].mxu0
    %v685 = vadd.f32 %v363, %v684
    %v686 = vpop.f32.mrb[0].mxu0
    %687 = vmatprep.mubr.f32.mxu0 0.0
    %688 = vmatmul.mubr.f32.gmra.mrb[0].mxu0 %v504
    %v689 = vpop.f32.mrb[0].mxu0
    %v690 = vadd.f32 %v368, %v689
    %v691 = vpop.f32.mrb[0].mxu0
    %692 = vmatprep.mubr.f32.mxu0 0.0
    %693 = vmatmul.mubr.f32.gmra.mrb[0].mxu0 %v507
    %v694 = vpop.f32.mrb[0].mxu0
    %v695 = vadd.f32 %v373, %v694
    %v696 = vpop.f32.mrb[0].mxu0
    %697 = vmatprep.mubr.f32.mxu0 0.0
    %698 = vmatmul.mubr.f32.gmra.mrb[0].mxu0 %v510
    %v699 = vpop.f32.mrb[0].mxu0
    %v700 = vadd.f32 %v378, %v699
    %v701 = vpop.f32.mrb[0].mxu0
    %702 = vmatprep.mubr.f32.mxu0 0.0
    %703 = vmatmul.mubr.f32.gmra.mrb[0].mxu0 %v513
    %v704 = vpop.f32.mrb[0].mxu0
    %v705 = vadd.f32 %v383, %v704
    %v706 = vpop.f32.mrb[0].mxu0
    %707 = vmatprep.mubr.f32.mxu0 0.0
    %708 = vmatmul.mubr.f32.gmra.mrb[0].mxu0 %v516
    %v709 = vpop.f32.mrb[0].mxu0
    %v710 = vadd.f32 %v388, %v709
    %v711 = vpop.f32.mrb[0].mxu0
    %712 = vmatprep.mubr.f32.mxu0 0.0
    %713 = vmatmul.mubr.f32.gmra.mrb[0].mxu0 %v519
    %v714 = vpop.f32.mrb[0].mxu0
    %v715 = vadd.f32 %v393, %v714
    %v716 = vpop.f32.mrb[0].mxu0
    %717 = vmatprep.mubr.f32.mxu0 0.0
    %718 = vmatmul.mubr.f32.gmra.mrb[0].mxu0 %v522
    %v719 = vpop.f32.mrb[0].mxu0
    %v720 = vadd.f32 %v398, %v719
    %v721 = vpop.f32.mrb[0].mxu0
    %722 = vmatprep.mubr.f32.mxu0 0.0
    %723 = vmatmul.mubr.f32.gmra.mrb[0].mxu0 %v525
    %v724 = vpop.f32.mrb[0].mxu0
    %v725 = vadd.f32 %v403, %v724
    %v726 = vpop.f32.mrb[0].mxu0
    %727 = vmatprep.mubr.f32.mxu0 0.0
    %728 = vmatmul.mubr.f32.gmra.mrb[0].mxu0 %v528
    %v729 = vpop.f32.mrb[0].mxu0
    %v730 = vadd.f32 %v408, %v729
    %v731 = vpop.f32.mrb[0].mxu0
    %732 = vmatprep.mubr.f32.mxu0 0.0
    %733 = vmatmul.mubr.f32.gmra.mrb[0].mxu0 %v531
    %v734 = vpop.f32.mrb[0].mxu0
    %v735 = vadd.f32 %v413, %v734
    %v736 = vpop.f32.mrb[0].mxu0
    %737 = vmatprep.mubr.f32.mxu0 0.0
    %738 = vmatmul.mubr.f32.gmra.mrb[0].mxu0 %v534
    %v739 = vpop.f32.mrb[0].mxu0
    %v740 = vadd.f32 %v418, %v739
    %v741 = vpop.f32.mrb[0].mxu0
    %742 = vmatprep.mubr.f32.mxu0 0.0
    %743 = vmatmul.mubr.f32.gmra.mrb[0].mxu0 %v537
    %v744 = vpop.f32.mrb[0].mxu0
    %v745 = vadd.f32 %v423, %v744
    %v746 = vpop.f32.mrb[0].mxu0
    %747 = vmatprep.mubr.f32.mxu0 0.0
    %748 = vmatmul.mubr.f32.gmra.mrb[0].mxu0 %v540
    %v749 = vpop.f32.mrb[0].mxu0
    %v750 = vadd.f32 %v428, %v749
    %v751 = vpop.f32.mrb[0].mxu0
    %752 = vmatprep.mubr.f32.mxu0 0.0
    %753 = vmatmul.mubr.f32.gmra.mrb[0].mxu0 %v543
    %v754 = vpop.f32.mrb[0].mxu0
    %v755 = vadd.f32 %v433, %v754
    %v756 = vpop.f32.mrb[0].mxu0
    %757 = vmatprep.mubr.f32.mxu0 0.0
    %758 = vmatmul.mubr.f32.gmra.mrb[0].mxu0 %v546
    %v759 = vpop.f32.mrb[0].mxu0
    %v760 = vadd.f32 %v438, %v759
    %v761 = vpop.f32.mrb[0].mxu0
    %762 = vmatprep.mubr.f32.mxu0 0.0
    %763 = vmatmul.mubr.f32.gmra.mrb[0].mxu0 %v549
    %v764 = vpop.f32.mrb[0].mxu0
    %v765 = vadd.f32 %v443, %v764
    %v766 = vpop.f32.mrb[0].mxu0
    %767 = vmatprep.mubr.f32.mxu0 0.0
    %768 = vmatmul.mubr.f32.gmra.mrb[0].mxu0 %v552
    %v769 = vpop.f32.mrb[0].mxu0
    %v770 = vadd.f32 %v448, %v769
    %v771 = vpop.f32.mrb[0].mxu0
    %772 = vmatprep.mubr.f32.mxu0 0.0
    %773 = vmatmul.mubr.f32.gmra.mrb[0].mxu0 %v555
    %v774 = vpop.f32.mrb[0].mxu0
    %v775 = vadd.f32 %v453, %v774
    %v776 = vpop.f32.mrb[0].mxu0
    %777 = vmatprep.mubr.f32.mxu0 0.0
    %778 = vmatmul.mubr.f32.gmra.mrb[0].mxu0 %v558
    %v779 = vpop.f32.mrb[0].mxu0
    %v780 = vadd.f32 %v458, %v779
    %v781 = vpop.f32.mrb[0].mxu0
    %782 = vmatprep.mubr.f32.mxu0 0.0
    %783 = vmatmul.mubr.f32.gmra.mrb[0].mxu0 %v561
    %v784 = vpop.f32.mrb[0].mxu0
    %v785 = vadd.f32 %v463, %v784
    %v786 = vpop.f32.mrb[0].mxu0
    %787 = vdwg.mxu0
    %v788 = vld [vmem:[%s6] sm:$0x1]
    %v790 = vlaneseq
    %v791 = vshrl.u32 %v790, 7
    %v792 = vsub.s32 0, %v791
    %v793 = vrot.slane %v788, %v792
    %v795 = vadd.f32 %v630, %v793
    %v796 = vadd.f32 %v635, %v793
    %v797 = vadd.f32 %v640, %v793
    %v798 = vadd.f32 %v645, %v793
    %v799 = vadd.f32 %v650, %v793
    %v800 = vadd.f32 %v655, %v793
    %v801 = vadd.f32 %v660, %v793
    %v802 = vadd.f32 %v665, %v793
    %v803 = vadd.f32 %v670, %v793
    %v804 = vadd.f32 %v675, %v793
    %v805 = vadd.f32 %v680, %v793
    %v806 = vadd.f32 %v685, %v793
    %v807 = vadd.f32 %v690, %v793
    %v808 = vadd.f32 %v695, %v793
    %v809 = vadd.f32 %v700, %v793
    %v810 = vadd.f32 %v705, %v793
    %v811 = vadd.f32 %v710, %v793
    %v812 = vadd.f32 %v715, %v793
    %v813 = vadd.f32 %v720, %v793
    %v814 = vadd.f32 %v725, %v793
    %v815 = vadd.f32 %v730, %v793
    %v816 = vadd.f32 %v735, %v793
    %v817 = vadd.f32 %v740, %v793
    %v818 = vadd.f32 %v745, %v793
    %v819 = vadd.f32 %v750, %v793
    %v820 = vadd.f32 %v755, %v793
    %v821 = vadd.f32 %v760, %v793
    %v822 = vadd.f32 %v765, %v793
    %v823 = vadd.f32 %v770, %v793
    %v824 = vadd.f32 %v775, %v793
    %v825 = vadd.f32 %v780, %v793
    %v826 = vadd.f32 %v785, %v793
    %v827 = vtanh.pop %v795
    %v828 = vtanh.pop %v796
    %v829 = vtanh.pop %v797
    %v830 = vtanh.pop %v798
    %v831 = vtanh.pop %v799
    %v832 = vtanh.pop %v800
    %v833 = vtanh.pop %v801
    %v834 = vtanh.pop %v802
    %v835 = vtanh.pop %v803
    %v836 = vtanh.pop %v804
    %v837 = vtanh.pop %v805
    %v838 = vtanh.pop %v806
    %v839 = vtanh.pop %v807
    %v840 = vtanh.pop %v808
    %v841 = vtanh.pop %v809
    %v842 = vtanh.pop %v810
    %v843 = vtanh.pop %v811
    %v844 = vtanh.pop %v812
    %v845 = vtanh.pop %v813
    %v846 = vtanh.pop %v814
    %v847 = vtanh.pop %v815
    %v848 = vtanh.pop %v816
    %v849 = vtanh.pop %v817
    %v850 = vtanh.pop %v818
    %v851 = vtanh.pop %v819
    %v852 = vtanh.pop %v820
    %v853 = vtanh.pop %v821
    %v854 = vtanh.pop %v822
    %v855 = vtanh.pop %v823
    %v856 = vtanh.pop %v824
    %v857 = vtanh.pop %v825
    %v858 = vtanh.pop %v826
    %v859 = vld [vmem:[%s7] sm:$0x1]
    %v861 = vlaneseq
    %v862 = vshrl.u32 %v861, 7
    %v863 = vsub.s32 0, %v862
    %v864 = vrot.slane %v859, %v863
    %v866 = vmul.f32 %v827, %v864
    %v867 = vmul.f32 %v828, %v864
    %v868 = vmul.f32 %v829, %v864
    %v869 = vmul.f32 %v830, %v864
    %v870 = vmul.f32 %v831, %v864
    %v871 = vmul.f32 %v832, %v864
    %v872 = vmul.f32 %v833, %v864
    %v873 = vmul.f32 %v834, %v864
    %v874 = vmul.f32 %v835, %v864
    %v875 = vmul.f32 %v836, %v864
    %v876 = vmul.f32 %v837, %v864
    %v877 = vmul.f32 %v838, %v864
    %v878 = vmul.f32 %v839, %v864
    %v879 = vmul.f32 %v840, %v864
    %v880 = vmul.f32 %v841, %v864
    %v881 = vmul.f32 %v842, %v864
    %v882 = vmul.f32 %v843, %v864
    %v883 = vmul.f32 %v844, %v864
    %v884 = vmul.f32 %v845, %v864
    %v885 = vmul.f32 %v846, %v864
    %v886 = vmul.f32 %v847, %v864
    %v887 = vmul.f32 %v848, %v864
    %v888 = vmul.f32 %v849, %v864
    %v889 = vmul.f32 %v850, %v864
    %v890 = vmul.f32 %v851, %v864
    %v891 = vmul.f32 %v852, %v864
    %v892 = vmul.f32 %v853, %v864
    %v893 = vmul.f32 %v854, %v864
    %v894 = vmul.f32 %v855, %v864
    %v895 = vmul.f32 %v856, %v864
    %v896 = vmul.f32 %v857, %v864
    %v897 = vmul.f32 %v858, %v864
    %vm898 = vcmask 261120
    %v899 = vsel %vm898, %v866, 0.0
    %900 = vadd.xlane.f32.xlu0 %v899
    %v901 = vpop.xlane.xlu0 %900
    %v902 = vsel %vm898, %v867, 0.0
    %903 = vadd.xlane.f32.xlu0 %v902
    %v904 = vpop.xlane.xlu0 %903
    %v905 = vsel %vm898, %v868, 0.0
    %906 = vadd.xlane.f32.xlu0 %v905
    %v907 = vpop.xlane.xlu0 %906
    %v908 = vsel %vm898, %v869, 0.0
    %909 = vadd.xlane.f32.xlu0 %v908
    %v910 = vpop.xlane.xlu0 %909
    %v911 = vsel %vm898, %v870, 0.0
    %912 = vadd.xlane.f32.xlu0 %v911
    %v913 = vpop.xlane.xlu0 %912
    %v914 = vsel %vm898, %v871, 0.0
    %915 = vadd.xlane.f32.xlu0 %v914
    %v916 = vpop.xlane.xlu0 %915
    %v917 = vsel %vm898, %v872, 0.0
    %918 = vadd.xlane.f32.xlu0 %v917
    %v919 = vpop.xlane.xlu0 %918
    %v920 = vsel %vm898, %v873, 0.0
    %921 = vadd.xlane.f32.xlu0 %v920
    %v922 = vpop.xlane.xlu0 %921
    %v923 = vsel %vm898, %v874, 0.0
    %924 = vadd.xlane.f32.xlu0 %v923
    %v925 = vpop.xlane.xlu0 %924
    %v926 = vsel %vm898, %v875, 0.0
    %927 = vadd.xlane.f32.xlu0 %v926
    %v928 = vpop.xlane.xlu0 %927
    %v929 = vsel %vm898, %v876, 0.0
    %930 = vadd.xlane.f32.xlu0 %v929
    %v931 = vpop.xlane.xlu0 %930
    %v932 = vsel %vm898, %v877, 0.0
    %933 = vadd.xlane.f32.xlu0 %v932
    %v934 = vpop.xlane.xlu0 %933
    %v935 = vsel %vm898, %v878, 0.0
    %936 = vadd.xlane.f32.xlu0 %v935
    %v937 = vpop.xlane.xlu0 %936
    %v938 = vsel %vm898, %v879, 0.0
    %939 = vadd.xlane.f32.xlu0 %v938
    %v940 = vpop.xlane.xlu0 %939
    %v941 = vsel %vm898, %v880, 0.0
    %942 = vadd.xlane.f32.xlu0 %v941
    %v943 = vpop.xlane.xlu0 %942
    %v944 = vsel %vm898, %v881, 0.0
    %945 = vadd.xlane.f32.xlu0 %v944
    %v946 = vpop.xlane.xlu0 %945
    %v947 = vsel %vm898, %v882, 0.0
    %948 = vadd.xlane.f32.xlu0 %v947
    %v949 = vpop.xlane.xlu0 %948
    %v950 = vsel %vm898, %v883, 0.0
    %951 = vadd.xlane.f32.xlu0 %v950
    %v952 = vpop.xlane.xlu0 %951
    %v953 = vsel %vm898, %v884, 0.0
    %954 = vadd.xlane.f32.xlu0 %v953
    %v955 = vpop.xlane.xlu0 %954
    %v956 = vsel %vm898, %v885, 0.0
    %957 = vadd.xlane.f32.xlu0 %v956
    %v958 = vpop.xlane.xlu0 %957
    %v959 = vsel %vm898, %v886, 0.0
    %960 = vadd.xlane.f32.xlu0 %v959
    %v961 = vpop.xlane.xlu0 %960
    %v962 = vsel %vm898, %v887, 0.0
    %963 = vadd.xlane.f32.xlu0 %v962
    %v964 = vpop.xlane.xlu0 %963
    %v965 = vsel %vm898, %v888, 0.0
    %966 = vadd.xlane.f32.xlu0 %v965
    %v967 = vpop.xlane.xlu0 %966
    %v968 = vsel %vm898, %v889, 0.0
    %969 = vadd.xlane.f32.xlu0 %v968
    %v970 = vpop.xlane.xlu0 %969
    %v971 = vsel %vm898, %v890, 0.0
    %972 = vadd.xlane.f32.xlu0 %v971
    %v973 = vpop.xlane.xlu0 %972
    %v974 = vsel %vm898, %v891, 0.0
    %975 = vadd.xlane.f32.xlu0 %v974
    %v976 = vpop.xlane.xlu0 %975
    %v977 = vsel %vm898, %v892, 0.0
    %978 = vadd.xlane.f32.xlu0 %v977
    %v979 = vpop.xlane.xlu0 %978
    %v980 = vsel %vm898, %v893, 0.0
    %981 = vadd.xlane.f32.xlu0 %v980
    %v982 = vpop.xlane.xlu0 %981
    %v983 = vsel %vm898, %v894, 0.0
    %984 = vadd.xlane.f32.xlu0 %v983
    %v985 = vpop.xlane.xlu0 %984
    %v986 = vsel %vm898, %v895, 0.0
    %987 = vadd.xlane.f32.xlu0 %v986
    %v988 = vpop.xlane.xlu0 %987
    %v989 = vsel %vm898, %v896, 0.0
    %990 = vadd.xlane.f32.xlu0 %v989
    %v991 = vpop.xlane.xlu0 %990
    %v992 = vsel %vm898, %v897, 0.0
    %993 = vadd.xlane.f32.xlu0 %v992
    %v994 = vpop.xlane.xlu0 %993
    %s995 = sld [smem:[#allocation2]]
    %v996 = vstv %s995
    %v997 = vadd.f32 %v901, %v996
    %v998 = vadd.f32 %v904, %v996
    %v999 = vadd.f32 %v907, %v996
    %v1000 = vadd.f32 %v910, %v996
    %v1001 = vadd.f32 %v913, %v996
    %v1002 = vadd.f32 %v916, %v996
    %v1003 = vadd.f32 %v919, %v996
    %v1004 = vadd.f32 %v922, %v996
    %v1005 = vadd.f32 %v925, %v996
    %v1006 = vadd.f32 %v928, %v996
    %v1007 = vadd.f32 %v931, %v996
    %v1008 = vadd.f32 %v934, %v996
    %v1009 = vadd.f32 %v937, %v996
    %v1010 = vadd.f32 %v940, %v996
    %v1011 = vadd.f32 %v943, %v996
    %v1012 = vadd.f32 %v946, %v996
    %v1013 = vadd.f32 %v949, %v996
    %v1014 = vadd.f32 %v952, %v996
    %v1015 = vadd.f32 %v955, %v996
    %v1016 = vadd.f32 %v958, %v996
    %v1017 = vadd.f32 %v961, %v996
    %v1018 = vadd.f32 %v964, %v996
    %v1019 = vadd.f32 %v967, %v996
    %v1020 = vadd.f32 %v970, %v996
    %v1021 = vadd.f32 %v973, %v996
    %v1022 = vadd.f32 %v976, %v996
    %v1023 = vadd.f32 %v979, %v996
    %v1024 = vadd.f32 %v982, %v996
    %v1025 = vadd.f32 %v985, %v996
    %v1026 = vadd.f32 %v988, %v996
    %v1027 = vadd.f32 %v991, %v996
    %v1028 = vadd.f32 %v994, %v996
    %v1029 = vxor.u32 %v997, 2147483648
    %v1030 = vxor.u32 %v998, 2147483648
    %v1031 = vxor.u32 %v999, 2147483648
    %v1032 = vxor.u32 %v1000, 2147483648
    %v1033 = vxor.u32 %v1001, 2147483648
    %v1034 = vxor.u32 %v1002, 2147483648
    %v1035 = vxor.u32 %v1003, 2147483648
    %v1036 = vxor.u32 %v1004, 2147483648
    %v1037 = vxor.u32 %v1005, 2147483648
    %v1038 = vxor.u32 %v1006, 2147483648
    %v1039 = vxor.u32 %v1007, 2147483648
    %v1040 = vxor.u32 %v1008, 2147483648
    %v1041 = vxor.u32 %v1009, 2147483648
    %v1042 = vxor.u32 %v1010, 2147483648
    %v1043 = vxor.u32 %v1011, 2147483648
    %v1044 = vxor.u32 %v1012, 2147483648
    %v1045 = vxor.u32 %v1013, 2147483648
    %v1046 = vxor.u32 %v1014, 2147483648
    %v1047 = vxor.u32 %v1015, 2147483648
    %v1048 = vxor.u32 %v1016, 2147483648
    %v1049 = vxor.u32 %v1017, 2147483648
    %v1050 = vxor.u32 %v1018, 2147483648
    %v1051 = vxor.u32 %v1019, 2147483648
    %v1052 = vxor.u32 %v1020, 2147483648
    %v1053 = vxor.u32 %v1021, 2147483648
    %v1054 = vxor.u32 %v1022, 2147483648
    %v1055 = vxor.u32 %v1023, 2147483648
    %v1056 = vxor.u32 %v1024, 2147483648
    %v1057 = vxor.u32 %v1025, 2147483648
    %v1058 = vxor.u32 %v1026, 2147483648
    %v1059 = vxor.u32 %v1027, 2147483648
    %v1060 = vxor.u32 %v1028, 2147483648
    %v1061 = vmul.f32 %v1029, 1.442695
    %v1062 = vpow.pop %v1061
    %v1063 = vmul.f32 %v1030, 1.442695
    %v1064 = vpow.pop %v1063
    %v1065 = vmul.f32 %v1031, 1.442695
    %v1066 = vpow.pop %v1065
    %v1067 = vmul.f32 %v1032, 1.442695
    %v1068 = vpow.pop %v1067
    %v1069 = vmul.f32 %v1033, 1.442695
    %v1070 = vpow.pop %v1069
    %v1071 = vmul.f32 %v1034, 1.442695
    %v1072 = vpow.pop %v1071
    %v1073 = vmul.f32 %v1035, 1.442695
    %v1074 = vpow.pop %v1073
    %v1075 = vmul.f32 %v1036, 1.442695
    %v1076 = vpow.pop %v1075
    %v1077 = vmul.f32 %v1037, 1.442695
    %v1078 = vpow.pop %v1077
    %v1079 = vmul.f32 %v1038, 1.442695
    %v1080 = vpow.pop %v1079
    %v1081 = vmul.f32 %v1039, 1.442695
    %v1082 = vpow.pop %v1081
    %v1083 = vmul.f32 %v1040, 1.442695
    %v1084 = vpow.pop %v1083
    %v1085 = vmul.f32 %v1041, 1.442695
    %v1086 = vpow.pop %v1085
    %v1087 = vmul.f32 %v1042, 1.442695
    %v1088 = vpow.pop %v1087
    %v1089 = vmul.f32 %v1043, 1.442695
    %v1090 = vpow.pop %v1089
    %v1091 = vmul.f32 %v1044, 1.442695
    %v1092 = vpow.pop %v1091
    %v1093 = vmul.f32 %v1045, 1.442695
    %v1094 = vpow.pop %v1093
    %v1095 = vmul.f32 %v1046, 1.442695
    %v1096 = vpow.pop %v1095
    %v1097 = vmul.f32 %v1047, 1.442695
    %v1098 = vpow.pop %v1097
    %v1099 = vmul.f32 %v1048, 1.442695
    %v1100 = vpow.pop %v1099
    %v1101 = vmul.f32 %v1049, 1.442695
    %v1102 = vpow.pop %v1101
    %v1103 = vmul.f32 %v1050, 1.442695
    %v1104 = vpow.pop %v1103
    %v1105 = vmul.f32 %v1051, 1.442695
    %v1106 = vpow.pop %v1105
    %v1107 = vmul.f32 %v1052, 1.442695
    %v1108 = vpow.pop %v1107
    %v1109 = vmul.f32 %v1053, 1.442695
    %v1110 = vpow.pop %v1109
    %v1111 = vmul.f32 %v1054, 1.442695
    %v1112 = vpow.pop %v1111
    %v1113 = vmul.f32 %v1055, 1.442695
    %v1114 = vpow.pop %v1113
    %v1115 = vmul.f32 %v1056, 1.442695
    %v1116 = vpow.pop %v1115
    %v1117 = vmul.f32 %v1057, 1.442695
    %v1118 = vpow.pop %v1117
    %v1119 = vmul.f32 %v1058, 1.442695
    %v1120 = vpow.pop %v1119
    %v1121 = vmul.f32 %v1059, 1.442695
    %v1122 = vpow.pop %v1121
    %v1123 = vmul.f32 %v1060, 1.442695
    %v1124 = vpow.pop %v1123
    %v1125 = vadd.f32 %v1062, 1.0
    %v1126 = vadd.f32 %v1064, 1.0
    %v1127 = vadd.f32 %v1066, 1.0
    %v1128 = vadd.f32 %v1068, 1.0
    %v1129 = vadd.f32 %v1070, 1.0
    %v1130 = vadd.f32 %v1072, 1.0
    %v1131 = vadd.f32 %v1074, 1.0
    %v1132 = vadd.f32 %v1076, 1.0
    %v1133 = vadd.f32 %v1078, 1.0
    %v1134 = vadd.f32 %v1080, 1.0
    %v1135 = vadd.f32 %v1082, 1.0
    %v1136 = vadd.f32 %v1084, 1.0
    %v1137 = vadd.f32 %v1086, 1.0
    %v1138 = vadd.f32 %v1088, 1.0
    %v1139 = vadd.f32 %v1090, 1.0
    %v1140 = vadd.f32 %v1092, 1.0
    %v1141 = vadd.f32 %v1094, 1.0
    %v1142 = vadd.f32 %v1096, 1.0
    %v1143 = vadd.f32 %v1098, 1.0
    %v1144 = vadd.f32 %v1100, 1.0
    %v1145 = vadd.f32 %v1102, 1.0
    %v1146 = vadd.f32 %v1104, 1.0
    %v1147 = vadd.f32 %v1106, 1.0
    %v1148 = vadd.f32 %v1108, 1.0
    %v1149 = vadd.f32 %v1110, 1.0
    %v1150 = vadd.f32 %v1112, 1.0
    %v1151 = vadd.f32 %v1114, 1.0
    %v1152 = vadd.f32 %v1116, 1.0
    %v1153 = vadd.f32 %v1118, 1.0
    %v1154 = vadd.f32 %v1120, 1.0
    %v1155 = vadd.f32 %v1122, 1.0
    %v1156 = vadd.f32 %v1124, 1.0
    %v1157 = vrcp.pop %v1125
    %v1158 = vmul.f32 1.0, %v1157
    %v1159 = vrcp.pop %v1126
    %v1160 = vmul.f32 1.0, %v1159
    %v1161 = vrcp.pop %v1127
    %v1162 = vmul.f32 1.0, %v1161
    %v1163 = vrcp.pop %v1128
    %v1164 = vmul.f32 1.0, %v1163
    %v1165 = vrcp.pop %v1129
    %v1166 = vmul.f32 1.0, %v1165
    %v1167 = vrcp.pop %v1130
    %v1168 = vmul.f32 1.0, %v1167
    %v1169 = vrcp.pop %v1131
    %v1170 = vmul.f32 1.0, %v1169
    %v1171 = vrcp.pop %v1132
    %v1172 = vmul.f32 1.0, %v1171
    %v1173 = vrcp.pop %v1133
    %v1174 = vmul.f32 1.0, %v1173
    %v1175 = vrcp.pop %v1134
    %v1176 = vmul.f32 1.0, %v1175
    %v1177 = vrcp.pop %v1135
    %v1178 = vmul.f32 1.0, %v1177
    %v1179 = vrcp.pop %v1136
    %v1180 = vmul.f32 1.0, %v1179
    %v1181 = vrcp.pop %v1137
    %v1182 = vmul.f32 1.0, %v1181
    %v1183 = vrcp.pop %v1138
    %v1184 = vmul.f32 1.0, %v1183
    %v1185 = vrcp.pop %v1139
    %v1186 = vmul.f32 1.0, %v1185
    %v1187 = vrcp.pop %v1140
    %v1188 = vmul.f32 1.0, %v1187
    %v1189 = vrcp.pop %v1141
    %v1190 = vmul.f32 1.0, %v1189
    %v1191 = vrcp.pop %v1142
    %v1192 = vmul.f32 1.0, %v1191
    %v1193 = vrcp.pop %v1143
    %v1194 = vmul.f32 1.0, %v1193
    %v1195 = vrcp.pop %v1144
    %v1196 = vmul.f32 1.0, %v1195
    %v1197 = vrcp.pop %v1145
    %v1198 = vmul.f32 1.0, %v1197
    %v1199 = vrcp.pop %v1146
    %v1200 = vmul.f32 1.0, %v1199
    %v1201 = vrcp.pop %v1147
    %v1202 = vmul.f32 1.0, %v1201
    %v1203 = vrcp.pop %v1148
    %v1204 = vmul.f32 1.0, %v1203
    %v1205 = vrcp.pop %v1149
    %v1206 = vmul.f32 1.0, %v1205
    %v1207 = vrcp.pop %v1150
    %v1208 = vmul.f32 1.0, %v1207
    %v1209 = vrcp.pop %v1151
    %v1210 = vmul.f32 1.0, %v1209
    %v1211 = vrcp.pop %v1152
    %v1212 = vmul.f32 1.0, %v1211
    %v1213 = vrcp.pop %v1153
    %v1214 = vmul.f32 1.0, %v1213
    %v1215 = vrcp.pop %v1154
    %v1216 = vmul.f32 1.0, %v1215
    %v1217 = vrcp.pop %v1155
    %v1218 = vmul.f32 1.0, %v1217
    %v1219 = vrcp.pop %v1156
    %v1220 = vmul.f32 1.0, %v1219
    %v1221 = vld [vmem:[%s9] sm:$0xff]
    %v1222 = vld [vmem:[%s9 + $0x8] sm:$0xff]
    %v1223 = vld [vmem:[%s9 + $0x10] sm:$0xff]
    %v1224 = vld [vmem:[%s9 + $0x18] sm:$0xff]
    %v1225 = vld [vmem:[%s9 + $0x20] sm:$0xff]
    %v1226 = vld [vmem:[%s9 + $0x28] sm:$0xff]
    %v1227 = vld [vmem:[%s9 + $0x30] sm:$0xff]
    %v1228 = vld [vmem:[%s9 + $0x38] sm:$0xff]
    %v1230 = vsel %vm466, %v43, 0
    %v1233 = vsel %vm466, %v44, 0
    %v1236 = vsel %vm466, %v45, 0
    %v1239 = vsel %vm466, %v46, 0
    %v1242 = vsel %vm466, %v47, 0
    %v1245 = vsel %vm466, %v48, 0
    %v1248 = vsel %vm466, %v49, 0
    %v1251 = vsel %vm466, %v50, 0
    %v1254 = vsel %vm466, %v51, 0
    %v1257 = vsel %vm466, %v52, 0
    %v1260 = vsel %vm466, %v53, 0
    %v1263 = vsel %vm466, %v54, 0
    %v1266 = vsel %vm466, %v55, 0
    %v1269 = vsel %vm466, %v56, 0
    %v1272 = vsel %vm466, %v57, 0
    %v1275 = vsel %vm466, %v58, 0
    %v1278 = vsel %vm466, %v59, 0
    %v1281 = vsel %vm466, %v60, 0
    %v1284 = vsel %vm466, %v61, 0
    %v1287 = vsel %vm466, %v62, 0
    %v1290 = vsel %vm466, %v63, 0
    %v1293 = vsel %vm466, %v64, 0
    %v1296 = vsel %vm466, %v65, 0
    %v1299 = vsel %vm466, %v66, 0
    %v1302 = vsel %vm466, %v67, 0
    %v1305 = vsel %vm466, %v68, 0
    %v1308 = vsel %vm466, %v69, 0
    %v1311 = vsel %vm466, %v70, 0
    %v1314 = vsel %vm466, %v71, 0
    %v1317 = vsel %vm466, %v72, 0
    %v1320 = vsel %vm466, %v73, 0
    %v1323 = vsel %vm466, %v74, 0
    %1325 = vmatprep.subr.mxu0 0.0
    %1326 = vmatpush1.msra.mxu0 %v1221
    %1327 = vmatprep.subr.mxu0 0.0
    %1328 = vmatpush1.msra.mxu0 %v1222
    %1329 = vmatprep.subr.mxu0 0.0
    %1330 = vmatpush1.msra.mxu0 %v1223
    %1331 = vmatprep.subr.mxu0 0.0
    %1332 = vmatpush1.msra.mxu0 %v1224
    %1333 = vmatprep.subr.mxu0 0.0
    %1334 = vmatpush1.msra.mxu0 %v1225
    %1335 = vmatprep.subr.mxu0 0.0
    %1336 = vmatpush1.msra.mxu0 %v1226
    %1337 = vmatprep.subr.mxu0 0.0
    %1338 = vmatpush1.msra.mxu0 %v1227
    %1339 = vmatprep.subr.mxu0 0.0
    %1340 = vmatpush1.msra.mxu0 %v1228
    %1341 = vmatprep.subr.mxu0 0.0
    %1342 = vmatpush1.msra.mxu0 0.0
    %1343 = vmatprep.subr.mxu0 0.0
    %1344 = vmatpush1.msra.mxu0 0.0
    %1345 = vmatprep.subr.mxu0 0.0
    %1346 = vmatpush1.msra.mxu0 0.0
    %1347 = vmatprep.subr.mxu0 0.0
    %1348 = vmatpush1.msra.mxu0 0.0
    %1349 = vmatprep.subr.mxu0 0.0
    %1350 = vmatpush1.msra.mxu0 0.0
    %1351 = vmatprep.subr.mxu0 0.0
    %1352 = vmatpush1.msra.mxu0 0.0
    %1353 = vmatprep.subr.mxu0 0.0
    %1354 = vmatpush1.msra.mxu0 0.0
    %1355 = vmatprep.subr.mxu0 0.0
    %1356 = vmatpush1.msra.mxu0 0.0
    %1357 = vmatprep.subr.mxu0 0.0
    %1358 = vmatpush1.msra.mxu0 0.0
    %1359 = vmatprep.subr.mxu0 0.0
    %1360 = vmatpush1.msra.mxu0 0.0
    %1361 = vmatprep.subr.mxu0 0.0
    %1362 = vmatpush1.msra.mxu0 0.0
    %1363 = vmatprep.subr.mxu0 0.0
    %1364 = vmatpush1.msra.mxu0 0.0
    %1365 = vmatprep.subr.mxu0 0.0
    %1366 = vmatpush1.msra.mxu0 0.0
    %1367 = vmatprep.subr.mxu0 0.0
    %1368 = vmatpush1.msra.mxu0 0.0
    %1369 = vmatprep.subr.mxu0 0.0
    %1370 = vmatpush1.msra.mxu0 0.0
    %1371 = vmatprep.subr.mxu0 0.0
    %1372 = vmatpush1.msra.mxu0 0.0
    %1373 = vmatprep.subr.mxu0 0.0
    %1374 = vmatpush1.msra.mxu0 0.0
    %1375 = vmatprep.subr.mxu0 0.0
    %1376 = vmatpush1.msra.mxu0 0.0
    %1377 = vmatprep.subr.mxu0 0.0
    %1378 = vmatpush1.msra.mxu0 0.0
    %1379 = vmatprep.subr.mxu0 0.0
    %1380 = vmatpush1.msra.mxu0 0.0
    %1381 = vmatprep.subr.mxu0 0.0
    %1382 = vmatpush1.msra.mxu0 0.0
    %1383 = vmatprep.subr.mxu0 0.0
    %1384 = vmatpush1.msra.mxu0 0.0
    %1385 = vmatprep.subr.mxu0 0.0
    %1386 = vmatpush1.msra.mxu0 0.0
    %1387 = vmatprep.subr.mxu0 0.0
    %1388 = vmatpush1.msra.mxu0 0.0
    %1389 = vmatprep.mubr.f32.mxu0 0.0
    %1390 = vmatmul.mubr.f32.gmra.mrb[0].mxu0 %v1230
    %v1391 = vpop.f32.mrb[0].mxu0
    %v1392 = vadd.f32 0.0, %v1391
    %v1393 = vpop.f32.mrb[0].mxu0
    %1394 = vmatprep.mubr.f32.mxu0 0.0
    %1395 = vmatmul.mubr.f32.gmra.mrb[0].mxu0 %v1233
    %v1396 = vpop.f32.mrb[0].mxu0
    %v1397 = vadd.f32 0.0, %v1396
    %v1398 = vpop.f32.mrb[0].mxu0
    %1399 = vmatprep.mubr.f32.mxu0 0.0
    %1400 = vmatmul.mubr.f32.gmra.mrb[0].mxu0 %v1236
    %v1401 = vpop.f32.mrb[0].mxu0
    %v1402 = vadd.f32 0.0, %v1401
    %v1403 = vpop.f32.mrb[0].mxu0
    %1404 = vmatprep.mubr.f32.mxu0 0.0
    %1405 = vmatmul.mubr.f32.gmra.mrb[0].mxu0 %v1239
    %v1406 = vpop.f32.mrb[0].mxu0
    %v1407 = vadd.f32 0.0, %v1406
    %v1408 = vpop.f32.mrb[0].mxu0
    %1409 = vmatprep.mubr.f32.mxu0 0.0
    %1410 = vmatmul.mubr.f32.gmra.mrb[0].mxu0 %v1242
    %v1411 = vpop.f32.mrb[0].mxu0
    %v1412 = vadd.f32 0.0, %v1411
    %v1413 = vpop.f32.mrb[0].mxu0
    %1414 = vmatprep.mubr.f32.mxu0 0.0
    %1415 = vmatmul.mubr.f32.gmra.mrb[0].mxu0 %v1245
    %v1416 = vpop.f32.mrb[0].mxu0
    %v1417 = vadd.f32 0.0, %v1416
    %v1418 = vpop.f32.mrb[0].mxu0
    %1419 = vmatprep.mubr.f32.mxu0 0.0
    %1420 = vmatmul.mubr.f32.gmra.mrb[0].mxu0 %v1248
    %v1421 = vpop.f32.mrb[0].mxu0
    %v1422 = vadd.f32 0.0, %v1421
    %v1423 = vpop.f32.mrb[0].mxu0
    %1424 = vmatprep.mubr.f32.mxu0 0.0
    %1425 = vmatmul.mubr.f32.gmra.mrb[0].mxu0 %v1251
    %v1426 = vpop.f32.mrb[0].mxu0
    %v1427 = vadd.f32 0.0, %v1426
    %v1428 = vpop.f32.mrb[0].mxu0
    %1429 = vmatprep.mubr.f32.mxu0 0.0
    %1430 = vmatmul.mubr.f32.gmra.mrb[0].mxu0 %v1254
    %v1431 = vpop.f32.mrb[0].mxu0
    %v1432 = vadd.f32 0.0, %v1431
    %v1433 = vpop.f32.mrb[0].mxu0
    %1434 = vmatprep.mubr.f32.mxu0 0.0
    %1435 = vmatmul.mubr.f32.gmra.mrb[0].mxu0 %v1257
    %v1436 = vpop.f32.mrb[0].mxu0
    %v1437 = vadd.f32 0.0, %v1436
    %v1438 = vpop.f32.mrb[0].mxu0
    %1439 = vmatprep.mubr.f32.mxu0 0.0
    %1440 = vmatmul.mubr.f32.gmra.mrb[0].mxu0 %v1260
    %v1441 = vpop.f32.mrb[0].mxu0
    %v1442 = vadd.f32 0.0, %v1441
    %v1443 = vpop.f32.mrb[0].mxu0
    %1444 = vmatprep.mubr.f32.mxu0 0.0
    %1445 = vmatmul.mubr.f32.gmra.mrb[0].mxu0 %v1263
    %v1446 = vpop.f32.mrb[0].mxu0
    %v1447 = vadd.f32 0.0, %v1446
    %v1448 = vpop.f32.mrb[0].mxu0
    %1449 = vmatprep.mubr.f32.mxu0 0.0
    %1450 = vmatmul.mubr.f32.gmra.mrb[0].mxu0 %v1266
    %v1451 = vpop.f32.mrb[0].mxu0
    %v1452 = vadd.f32 0.0, %v1451
    %v1453 = vpop.f32.mrb[0].mxu0
    %1454 = vmatprep.mubr.f32.mxu0 0.0
    %1455 = vmatmul.mubr.f32.gmra.mrb[0].mxu0 %v1269
    %v1456 = vpop.f32.mrb[0].mxu0
    %v1457 = vadd.f32 0.0, %v1456
    %v1458 = vpop.f32.mrb[0].mxu0
    %1459 = vmatprep.mubr.f32.mxu0 0.0
    %1460 = vmatmul.mubr.f32.gmra.mrb[0].mxu0 %v1272
    %v1461 = vpop.f32.mrb[0].mxu0
    %v1462 = vadd.f32 0.0, %v1461
    %v1463 = vpop.f32.mrb[0].mxu0
    %1464 = vmatprep.mubr.f32.mxu0 0.0
    %1465 = vmatmul.mubr.f32.gmra.mrb[0].mxu0 %v1275
    %v1466 = vpop.f32.mrb[0].mxu0
    %v1467 = vadd.f32 0.0, %v1466
    %v1468 = vpop.f32.mrb[0].mxu0
    %1469 = vmatprep.mubr.f32.mxu0 0.0
    %1470 = vmatmul.mubr.f32.gmra.mrb[0].mxu0 %v1278
    %v1471 = vpop.f32.mrb[0].mxu0
    %v1472 = vadd.f32 0.0, %v1471
    %v1473 = vpop.f32.mrb[0].mxu0
    %1474 = vmatprep.mubr.f32.mxu0 0.0
    %1475 = vmatmul.mubr.f32.gmra.mrb[0].mxu0 %v1281
    %v1476 = vpop.f32.mrb[0].mxu0
    %v1477 = vadd.f32 0.0, %v1476
    %v1478 = vpop.f32.mrb[0].mxu0
    %1479 = vmatprep.mubr.f32.mxu0 0.0
    %1480 = vmatmul.mubr.f32.gmra.mrb[0].mxu0 %v1284
    %v1481 = vpop.f32.mrb[0].mxu0
    %v1482 = vadd.f32 0.0, %v1481
    %v1483 = vpop.f32.mrb[0].mxu0
    %1484 = vmatprep.mubr.f32.mxu0 0.0
    %1485 = vmatmul.mubr.f32.gmra.mrb[0].mxu0 %v1287
    %v1486 = vpop.f32.mrb[0].mxu0
    %v1487 = vadd.f32 0.0, %v1486
    %v1488 = vpop.f32.mrb[0].mxu0
    %1489 = vmatprep.mubr.f32.mxu0 0.0
    %1490 = vmatmul.mubr.f32.gmra.mrb[0].mxu0 %v1290
    %v1491 = vpop.f32.mrb[0].mxu0
    %v1492 = vadd.f32 0.0, %v1491
    %v1493 = vpop.f32.mrb[0].mxu0
    %1494 = vmatprep.mubr.f32.mxu0 0.0
    %1495 = vmatmul.mubr.f32.gmra.mrb[0].mxu0 %v1293
    %v1496 = vpop.f32.mrb[0].mxu0
    %v1497 = vadd.f32 0.0, %v1496
    %v1498 = vpop.f32.mrb[0].mxu0
    %1499 = vmatprep.mubr.f32.mxu0 0.0
    %1500 = vmatmul.mubr.f32.gmra.mrb[0].mxu0 %v1296
    %v1501 = vpop.f32.mrb[0].mxu0
    %v1502 = vadd.f32 0.0, %v1501
    %v1503 = vpop.f32.mrb[0].mxu0
    %1504 = vmatprep.mubr.f32.mxu0 0.0
    %1505 = vmatmul.mubr.f32.gmra.mrb[0].mxu0 %v1299
    %v1506 = vpop.f32.mrb[0].mxu0
    %v1507 = vadd.f32 0.0, %v1506
    %v1508 = vpop.f32.mrb[0].mxu0
    %1509 = vmatprep.mubr.f32.mxu0 0.0
    %1510 = vmatmul.mubr.f32.gmra.mrb[0].mxu0 %v1302
    %v1511 = vpop.f32.mrb[0].mxu0
    %v1512 = vadd.f32 0.0, %v1511
    %v1513 = vpop.f32.mrb[0].mxu0
    %1514 = vmatprep.mubr.f32.mxu0 0.0
    %1515 = vmatmul.mubr.f32.gmra.mrb[0].mxu0 %v1305
    %v1516 = vpop.f32.mrb[0].mxu0
    %v1517 = vadd.f32 0.0, %v1516
    %v1518 = vpop.f32.mrb[0].mxu0
    %1519 = vmatprep.mubr.f32.mxu0 0.0
    %1520 = vmatmul.mubr.f32.gmra.mrb[0].mxu0 %v1308
    %v1521 = vpop.f32.mrb[0].mxu0
    %v1522 = vadd.f32 0.0, %v1521
    %v1523 = vpop.f32.mrb[0].mxu0
    %1524 = vmatprep.mubr.f32.mxu0 0.0
    %1525 = vmatmul.mubr.f32.gmra.mrb[0].mxu0 %v1311
    %v1526 = vpop.f32.mrb[0].mxu0
    %v1527 = vadd.f32 0.0, %v1526
    %v1528 = vpop.f32.mrb[0].mxu0
    %1529 = vmatprep.mubr.f32.mxu0 0.0
    %1530 = vmatmul.mubr.f32.gmra.mrb[0].mxu0 %v1314
    %v1531 = vpop.f32.mrb[0].mxu0
    %v1532 = vadd.f32 0.0, %v1531
    %v1533 = vpop.f32.mrb[0].mxu0
    %1534 = vmatprep.mubr.f32.mxu0 0.0
    %1535 = vmatmul.mubr.f32.gmra.mrb[0].mxu0 %v1317
    %v1536 = vpop.f32.mrb[0].mxu0
    %v1537 = vadd.f32 0.0, %v1536
    %v1538 = vpop.f32.mrb[0].mxu0
    %1539 = vmatprep.mubr.f32.mxu0 0.0
    %1540 = vmatmul.mubr.f32.gmra.mrb[0].mxu0 %v1320
    %v1541 = vpop.f32.mrb[0].mxu0
    %v1542 = vadd.f32 0.0, %v1541
    %v1543 = vpop.f32.mrb[0].mxu0
    %1544 = vmatprep.mubr.f32.mxu0 0.0
    %1545 = vmatmul.mubr.f32.gmra.mrb[0].mxu0 %v1323
    %v1546 = vpop.f32.mrb[0].mxu0
    %v1547 = vadd.f32 0.0, %v1546
    %v1548 = vpop.f32.mrb[0].mxu0
    %1549 = vdwg.mxu0
    %v1550 = vld [vmem:[%s10] sm:$0x1]
    %v1552 = vlaneseq
    %v1553 = vshrl.u32 %v1552, 7
    %v1554 = vsub.s32 0, %v1553
    %v1555 = vrot.slane %v1550, %v1554
    %v1557 = vmul.f32 %v1392, %v1555
    %v1558 = vmul.f32 %v1397, %v1555
    %v1559 = vmul.f32 %v1402, %v1555
    %v1560 = vmul.f32 %v1407, %v1555
    %v1561 = vmul.f32 %v1412, %v1555
    %v1562 = vmul.f32 %v1417, %v1555
    %v1563 = vmul.f32 %v1422, %v1555
    %v1564 = vmul.f32 %v1427, %v1555
    %v1565 = vmul.f32 %v1432, %v1555
    %v1566 = vmul.f32 %v1437, %v1555
    %v1567 = vmul.f32 %v1442, %v1555
    %v1568 = vmul.f32 %v1447, %v1555
    %v1569 = vmul.f32 %v1452, %v1555
    %v1570 = vmul.f32 %v1457, %v1555
    %v1571 = vmul.f32 %v1462, %v1555
    %v1572 = vmul.f32 %v1467, %v1555
    %v1573 = vmul.f32 %v1472, %v1555
    %v1574 = vmul.f32 %v1477, %v1555
    %v1575 = vmul.f32 %v1482, %v1555
    %v1576 = vmul.f32 %v1487, %v1555
    %v1577 = vmul.f32 %v1492, %v1555
    %v1578 = vmul.f32 %v1497, %v1555
    %v1579 = vmul.f32 %v1502, %v1555
    %v1580 = vmul.f32 %v1507, %v1555
    %v1581 = vmul.f32 %v1512, %v1555
    %v1582 = vmul.f32 %v1517, %v1555
    %v1583 = vmul.f32 %v1522, %v1555
    %v1584 = vmul.f32 %v1527, %v1555
    %v1585 = vmul.f32 %v1532, %v1555
    %v1586 = vmul.f32 %v1537, %v1555
    %v1587 = vmul.f32 %v1542, %v1555
    %v1588 = vmul.f32 %v1547, %v1555
    %v1589 = vld [vmem:[%s11] sm:$0x1]
    %v1591 = vlaneseq
    %v1592 = vshrl.u32 %v1591, 7
    %v1593 = vsub.s32 0, %v1592
    %v1594 = vrot.slane %v1589, %v1593
    %v1596 = vadd.f32 %v1557, %v1594
    %v1597 = vadd.f32 %v1558, %v1594
    %v1598 = vadd.f32 %v1559, %v1594
    %v1599 = vadd.f32 %v1560, %v1594
    %v1600 = vadd.f32 %v1561, %v1594
    %v1601 = vadd.f32 %v1562, %v1594
    %v1602 = vadd.f32 %v1563, %v1594
    %v1603 = vadd.f32 %v1564, %v1594
    %v1604 = vadd.f32 %v1565, %v1594
    %v1605 = vadd.f32 %v1566, %v1594
    %v1606 = vadd.f32 %v1567, %v1594
    %v1607 = vadd.f32 %v1568, %v1594
    %v1608 = vadd.f32 %v1569, %v1594
    %v1609 = vadd.f32 %v1570, %v1594
    %v1610 = vadd.f32 %v1571, %v1594
    %v1611 = vadd.f32 %v1572, %v1594
    %v1612 = vadd.f32 %v1573, %v1594
    %v1613 = vadd.f32 %v1574, %v1594
    %v1614 = vadd.f32 %v1575, %v1594
    %v1615 = vadd.f32 %v1576, %v1594
    %v1616 = vadd.f32 %v1577, %v1594
    %v1617 = vadd.f32 %v1578, %v1594
    %v1618 = vadd.f32 %v1579, %v1594
    %v1619 = vadd.f32 %v1580, %v1594
    %v1620 = vadd.f32 %v1581, %v1594
    %v1621 = vadd.f32 %v1582, %v1594
    %v1622 = vadd.f32 %v1583, %v1594
    %v1623 = vadd.f32 %v1584, %v1594
    %v1624 = vadd.f32 %v1585, %v1594
    %v1625 = vadd.f32 %v1586, %v1594
    %v1626 = vadd.f32 %v1587, %v1594
    %v1627 = vadd.f32 %v1588, %v1594
    %v1628 = vmax.f32 %v1596, 0.0
    %v1629 = vmax.f32 %v1597, 0.0
    %v1630 = vmax.f32 %v1598, 0.0
    %v1631 = vmax.f32 %v1599, 0.0
    %v1632 = vmax.f32 %v1600, 0.0
    %v1633 = vmax.f32 %v1601, 0.0
    %v1634 = vmax.f32 %v1602, 0.0
    %v1635 = vmax.f32 %v1603, 0.0
    %v1636 = vmax.f32 %v1604, 0.0
    %v1637 = vmax.f32 %v1605, 0.0
    %v1638 = vmax.f32 %v1606, 0.0
    %v1639 = vmax.f32 %v1607, 0.0
    %v1640 = vmax.f32 %v1608, 0.0
    %v1641 = vmax.f32 %v1609, 0.0
    %v1642 = vmax.f32 %v1610, 0.0
    %v1643 = vmax.f32 %v1611, 0.0
    %v1644 = vmax.f32 %v1612, 0.0
    %v1645 = vmax.f32 %v1613, 0.0
    %v1646 = vmax.f32 %v1614, 0.0
    %v1647 = vmax.f32 %v1615, 0.0
    %v1648 = vmax.f32 %v1616, 0.0
    %v1649 = vmax.f32 %v1617, 0.0
    %v1650 = vmax.f32 %v1618, 0.0
    %v1651 = vmax.f32 %v1619, 0.0
    %v1652 = vmax.f32 %v1620, 0.0
    %v1653 = vmax.f32 %v1621, 0.0
    %v1654 = vmax.f32 %v1622, 0.0
    %v1655 = vmax.f32 %v1623, 0.0
    %v1656 = vmax.f32 %v1624, 0.0
    %v1657 = vmax.f32 %v1625, 0.0
    %v1658 = vmax.f32 %v1626, 0.0
    %v1659 = vmax.f32 %v1627, 0.0
    %v1660 = vmul.f32 %v1628, %v1158
    %v1661 = vmul.f32 %v1629, %v1160
    %v1662 = vmul.f32 %v1630, %v1162
    %v1663 = vmul.f32 %v1631, %v1164
    %v1664 = vmul.f32 %v1632, %v1166
    %v1665 = vmul.f32 %v1633, %v1168
    %v1666 = vmul.f32 %v1634, %v1170
    %v1667 = vmul.f32 %v1635, %v1172
    %v1668 = vmul.f32 %v1636, %v1174
    %v1669 = vmul.f32 %v1637, %v1176
    %v1670 = vmul.f32 %v1638, %v1178
    %v1671 = vmul.f32 %v1639, %v1180
    %v1672 = vmul.f32 %v1640, %v1182
    %v1673 = vmul.f32 %v1641, %v1184
    %v1674 = vmul.f32 %v1642, %v1186
    %v1675 = vmul.f32 %v1643, %v1188
    %v1676 = vmul.f32 %v1644, %v1190
    %v1677 = vmul.f32 %v1645, %v1192
    %v1678 = vmul.f32 %v1646, %v1194
    %v1679 = vmul.f32 %v1647, %v1196
    %v1680 = vmul.f32 %v1648, %v1198
    %v1681 = vmul.f32 %v1649, %v1200
    %v1682 = vmul.f32 %v1650, %v1202
    %v1683 = vmul.f32 %v1651, %v1204
    %v1684 = vmul.f32 %v1652, %v1206
    %v1685 = vmul.f32 %v1653, %v1208
    %v1686 = vmul.f32 %v1654, %v1210
    %v1687 = vmul.f32 %v1655, %v1212
    %v1688 = vmul.f32 %v1656, %v1214
    %v1689 = vmul.f32 %v1657, %v1216
    %v1690 = vmul.f32 %v1658, %v1218
    %v1691 = vmul.f32 %v1659, %v1220
    %1692 = vxpose.xlu0.b32.start [1/16] %v1660, 128
    %1693 = vxpose.xlu0.b32.cont [2/16] %v1661, 128
    %1694 = vxpose.xlu0.b32.cont [3/16] %v1662, 128
    %1695 = vxpose.xlu0.b32.cont [4/16] %v1663, 128
    %1696 = vxpose.xlu0.b32.cont [5/16] %v1664, 128
    %1697 = vxpose.xlu0.b32.cont [6/16] %v1665, 128
    %1698 = vxpose.xlu0.b32.cont [7/16] %v1666, 128
    %1699 = vxpose.xlu0.b32.cont [8/16] %v1667, 128
    %1700 = vxpose.xlu0.b32.cont [9/16] %v1668, 128
    %1701 = vxpose.xlu0.b32.cont [10/16] %v1669, 128
    %1702 = vxpose.xlu0.b32.cont [11/16] %v1670, 128
    %1703 = vxpose.xlu0.b32.cont [12/16] %v1671, 128
    %1704 = vxpose.xlu0.b32.cont [13/16] %v1672, 128
    %1705 = vxpose.xlu0.b32.cont [14/16] %v1673, 128
    %1706 = vxpose.xlu0.b32.cont [15/16] %v1674, 128
    %1707 = vxpose.xlu0.b32.end [16/16] %v1675, 128
    %v1708 = vpop.trf.xlu0
    %v1709 = vpop.trf.xlu0
    %v1710 = vpop.trf.xlu0
    %v1711 = vpop.trf.xlu0
    %v1712 = vpop.trf.xlu0
    %v1713 = vpop.trf.xlu0
    %v1714 = vpop.trf.xlu0
    %v1715 = vpop.trf.xlu0
    %v1716 = vpop.trf.xlu0
    %v1717 = vpop.trf.xlu0
    %v1718 = vpop.trf.xlu0
    %v1719 = vpop.trf.xlu0
    %v1720 = vpop.trf.xlu0
    %v1721 = vpop.trf.xlu0
    %v1722 = vpop.trf.xlu0
    %v1723 = vpop.trf.xlu0
    %1724 = vxpose.xlu0.b32.start [1/16] %v1676, 128
    %1725 = vxpose.xlu0.b32.cont [2/16] %v1677, 128
    %1726 = vxpose.xlu0.b32.cont [3/16] %v1678, 128
    %1727 = vxpose.xlu0.b32.cont [4/16] %v1679, 128
    %1728 = vxpose.xlu0.b32.cont [5/16] %v1680, 128
    %1729 = vxpose.xlu0.b32.cont [6/16] %v1681, 128
    %1730 = vxpose.xlu0.b32.cont [7/16] %v1682, 128
    %1731 = vxpose.xlu0.b32.cont [8/16] %v1683, 128
    %1732 = vxpose.xlu0.b32.cont [9/16] %v1684, 128
    %1733 = vxpose.xlu0.b32.cont [10/16] %v1685, 128
    %1734 = vxpose.xlu0.b32.cont [11/16] %v1686, 128
    %1735 = vxpose.xlu0.b32.cont [12/16] %v1687, 128
    %1736 = vxpose.xlu0.b32.cont [13/16] %v1688, 128
    %1737 = vxpose.xlu0.b32.cont [14/16] %v1689, 128
    %1738 = vxpose.xlu0.b32.cont [15/16] %v1690, 128
    %1739 = vxpose.xlu0.b32.end [16/16] %v1691, 128
    %v1740 = vpop.trf.xlu0
    %v1741 = vpop.trf.xlu0
    %v1742 = vpop.trf.xlu0
    %v1743 = vpop.trf.xlu0
    %v1744 = vpop.trf.xlu0
    %v1745 = vpop.trf.xlu0
    %v1746 = vpop.trf.xlu0
    %v1747 = vpop.trf.xlu0
    %v1748 = vpop.trf.xlu0
    %v1749 = vpop.trf.xlu0
    %v1750 = vpop.trf.xlu0
    %v1751 = vpop.trf.xlu0
    %v1752 = vpop.trf.xlu0
    %v1753 = vpop.trf.xlu0
    %v1754 = vpop.trf.xlu0
    %v1755 = vpop.trf.xlu0
    %1756 = vst [vmem:[#allocation3] sm:$0xff] %v1708
    %1757 = vst [vmem:[#allocation3 + $0x8] sm:$0xff] %v1740
    %1758 = vst [vmem:[#allocation3 + $0x10] sm:$0xff] %v1709
    %1759 = vst [vmem:[#allocation3 + $0x18] sm:$0xff] %v1741
    %1760 = vst [vmem:[#allocation3 + $0x20] sm:$0xff] %v1710
    %1761 = vst [vmem:[#allocation3 + $0x28] sm:$0xff] %v1742
    %1762 = vst [vmem:[#allocation3 + $0x30] sm:$0xff] %v1711
    %1763 = vst [vmem:[#allocation3 + $0x38] sm:$0xff] %v1743
    %1764 = vst [vmem:[#allocation3 + $0x40] sm:$0xff] %v1712
    %1765 = vst [vmem:[#allocation3 + $0x48] sm:$0xff] %v1744
    %1766 = vst [vmem:[#allocation3 + $0x50] sm:$0xff] %v1713
    %1767 = vst [vmem:[#allocation3 + $0x58] sm:$0xff] %v1745
    %1768 = vst [vmem:[#allocation3 + $0x60] sm:$0xff] %v1714
    %1769 = vst [vmem:[#allocation3 + $0x68] sm:$0xff] %v1746
    %1770 = vst [vmem:[#allocation3 + $0x70] sm:$0xff] %v1715
    %1771 = vst [vmem:[#allocation3 + $0x78] sm:$0xff] %v1747
    %1772 = vst [vmem:[#allocation3 + $0x80] sm:$0xff] %v1716
    %1773 = vst [vmem:[#allocation3 + $0x88] sm:$0xff] %v1748
    %1774 = vst [vmem:[#allocation3 + $0x90] sm:$0xff] %v1717
    %1775 = vst [vmem:[#allocation3 + $0x98] sm:$0xff] %v1749
    %1776 = vst [vmem:[#allocation3 + $0xa0] sm:$0xff] %v1718
    %1777 = vst [vmem:[#allocation3 + $0xa8] sm:$0xff] %v1750
    %1778 = vst [vmem:[#allocation3 + $0xb0] sm:$0xff] %v1719
    %1779 = vst [vmem:[#allocation3 + $0xb8] sm:$0xff] %v1751
    %1780 = vst [vmem:[#allocation3 + $0xc0] sm:$0xff] %v1720
    %1781 = vst [vmem:[#allocation3 + $0xc8] sm:$0xff] %v1752
    %1782 = vst [vmem:[#allocation3 + $0xd0] sm:$0xff] %v1721
    %1783 = vst [vmem:[#allocation3 + $0xd8] sm:$0xff] %v1753
    %1784 = vst [vmem:[#allocation3 + $0xe0] sm:$0xff] %v1722
    %1785 = vst [vmem:[#allocation3 + $0xe8] sm:$0xff] %v1754
    %1786 = vst [vmem:[#allocation3 + $0xf0] sm:$0xff] %v1723
    %1787 = vst [vmem:[#allocation3 + $0xf8] sm:$0xff] %v1755
    // Predicated region
    $region50: #{tpu_custom_call.1} parent=1 // pred_check
      _
    $region51: #{tpu_custom_call.1} parent=1 // pred_check_branch
      %1789 = sbr.rel (0) target = $region53
    $region52: #{tpu_custom_call.1} parent=1 // pred_region
      %s1791 = ssub.s32 4096, 4096
      %1792 = vsyncadd [#allocation4], %s1791
      %s1793 = sshll.u32 [#allocation3], 4
      %s1794 = int_to_ptr.vmem [resolvable:$true] %s1793
      %1799 = dma.vmem_to_hbm [thread:$0]  %s1794, 4096, %s12, [#allocation4], 256, 256, 16
    $region53: #{tpu_custom_call.1} parent=1 // pred_fallthru
      _
    // Predicated region
    $region54: #{tpu_custom_call.1} parent=1 // pred_check
      _
    $region55: #{tpu_custom_call.1} parent=1 // pred_check_branch
      %1801 = sbr.rel (0) target = $region57
    $region56: #{tpu_custom_call.1} parent=1 // pred_region
      %1802 = dma.done [#allocation4], 4096
    $region57: #{tpu_custom_call.1} parent=1 // pred_fallthru
      _
    %1803 = vsyncpa [#allocation4], 1

</llo_original>
